<compile_context>
chip_gen: v6e
topology: v6e:2x2x1
jax: 0.10.0
libtpu: 0.0.40
codegen_flags: <defaults>
</compile_context>

<pallas_src>
import numpy as np
import jax
import jax.numpy as jnp
from jax.experimental import pallas as pl
from jax.experimental.pallas import tpu as pltpu


def _round_up(x: int, m: int) -> int:
    return ((x + m - 1) // m) * m


def _make_attn_kernel(num_heads: int, head_dim: int):
    scale = 1.0 / float(np.sqrt(head_dim))

    def attn_kernel(x_ref, kp_ref, vp_ref, mask_ref, w_ref, b_ref, o_ref):
        # x_ref:    (1, nh, TS, hd)   hidden states, head-split, current seq tile
        # kp_ref:   (nh, Nkv_pad, hd) key parameter embeddings (zero-padded rows)
        # vp_ref:   (nh, Nkv_pad, hd) value parameter embeddings (zero-padded rows)
        # mask_ref: (1, 1, Nkv_pad)   additive mask (-inf in padded columns)
        # w_ref:    (nh, hd, H)       o_proj weight, pre-transposed + head-split
        # b_ref:    (1, H)            o_proj bias
        # o_ref:    (1, TS, H)        output tile
        q = x_ref[0]            # (nh, TS, hd), native dtype -> MXU
        kp = kp_ref[...]        # (nh, Nkv_pad, hd)
        vp = vp_ref[...]        # (nh, Nkv_pad, hd)
        mask = mask_ref[...].astype(jnp.float32)          # (1, 1, Nkv_pad)

        # All-heads scores in a single batched contraction, f32 accumulation.
        scores = jnp.einsum("htd,hkd->htk", q, kp,
                            preferred_element_type=jnp.float32) * scale
        scores = scores + mask                            # (nh, TS, Nkv_pad)

        # Softmax statistics in f32; reciprocal on the EUP slot.
        m = jnp.max(scores, axis=-1, keepdims=True)
        e = jnp.exp(scores - m)
        denom = jnp.sum(e, axis=-1, keepdims=True)
        p = (e * pl.reciprocal(denom, approx=True)).astype(q.dtype)

        # All-heads p @ v in a single batched contraction.
        attn = jnp.einsum("htk,hkd->htd", p, vp,
                          preferred_element_type=jnp.float32).astype(q.dtype)

        # o_proj: concat_h(attn_h) @ W.T == sum_h attn_h @ W.T[h*hd:(h+1)*hd, :]
        # (K-blocked matmul; no in-kernel transpose/concatenate needed).
        acc = jnp.dot(attn[0], w_ref[0], preferred_element_type=jnp.float32)
        for h in range(1, num_heads):
            acc = acc + jnp.dot(attn[h], w_ref[h],
                                preferred_element_type=jnp.float32)
        acc = acc + b_ref[...].astype(jnp.float32)
        o_ref[0] = acc.astype(o_ref.dtype)

    return attn_kernel


def scalable_tokenized_attention(hidden_states, attention_mask, params,
                                 *, num_heads, seq_tile=None):
    """Pallas implementation of ScalableTokenizedAttention.forward."""
    B, S, H = hidden_states.shape
    nh = num_heads
    hd = H // nh
    dtype = hidden_states.dtype

    key_emb = params["key_parameter_embeddings"]      # (Nkv, H)
    value_emb = params["value_parameter_embeddings"]  # (Nkv, H)
    o_w = params["o_proj_weight"]                     # (H, H), (out, in)
    o_b = params["o_proj_bias"]                       # (H,)
    Nkv = key_emb.shape[0]

    # ---- one-time wrapper glue (plain XLA, outside the kernel) ------------
    # Lane-dense Nkv: pad up to a multiple of 128.
    Nkv_pad = max(128, _round_up(Nkv, 128))

    # Replicate the PyTorch mask pad/slice semantics, then lane padding.
    if attention_mask is None:
        mask = jnp.zeros((B, Nkv), jnp.float32)
    else:
        mask = attention_mask.astype(jnp.float32)
        L = mask.shape[-1]
        if L < Nkv:
            mask = jnp.pad(mask, ((0, 0), (0, Nkv - L)),
                           constant_values=float("-inf"))
        elif L > Nkv:
            mask = mask[:, :Nkv]
    if Nkv_pad > Nkv:
        mask = jnp.pad(mask, ((0, 0), (0, Nkv_pad - Nkv)),
                       constant_values=float("-inf"))
    mask3 = mask.reshape(B, 1, Nkv_pad)

    # Head-split parameter embeddings once; zero-pad the padded Nkv rows.
    kp = key_emb.astype(dtype).reshape(Nkv, nh, hd).transpose(1, 0, 2)
    vp = value_emb.astype(dtype).reshape(Nkv, nh, hd).transpose(1, 0, 2)
    if Nkv_pad > Nkv:
        kp = jnp.pad(kp, ((0, 0), (0, Nkv_pad - Nkv), (0, 0)))
        vp = jnp.pad(vp, ((0, 0), (0, Nkv_pad - Nkv), (0, 0)))

    # Sequence tiling.
    if seq_tile is None:
        seq_tile = min(256, _round_up(S, 8))
    TS = seq_tile
    S_pad = _round_up(S, TS)
    x = hidden_states
    if S_pad > S:
        x = jnp.pad(x, ((0, 0), (0, S_pad - S), (0, 0)))
    x_heads = x.reshape(B, S_pad, nh, hd).transpose(0, 2, 1, 3)  # (B, nh, S_pad, hd)

    # Pre-transposed o_proj weight (in, out), split along the input dim by head.
    w2 = o_w.astype(dtype).T.reshape(nh, hd, H)                  # (nh, hd, H)
    bias2 = o_b.reshape(1, H)

    kernel = _make_attn_kernel(nh, hd)
    grid = (B, S_pad // TS)

    # Advisory cost estimate for the XLA scheduler.
    flops = int(2 * B * nh * S_pad * Nkv_pad * hd * 2 + 2 * B * S_pad * H * H)
    transc = int(B * nh * S_pad * Nkv_pad)
    bytes_acc = int(x_heads.size * x_heads.dtype.itemsize
                    + kp.size * kp.dtype.itemsize
                    + vp.size * vp.dtype.itemsize
                    + mask3.size * 4
                    + w2.size * w2.dtype.itemsize
                    + H * o_b.dtype.itemsize
                    + B * S_pad * H * jnp.dtype(dtype).itemsize)
    cost = pl.CostEstimate(flops=flops, transcendentals=transc,
                           bytes_accessed=bytes_acc)

    # Raise the scoped VMEM limit only when the estimated footprint needs it
    # (resident params + double-buffered in/out tiles).
    itm = jnp.dtype(dtype).itemsize
    vmem_est = (2 * (nh * TS * hd + TS * H) * itm          # in/out tiles (x2 bufs)
                + 2 * (2 * nh * Nkv_pad * hd + nh * hd * H) * itm
                + 2 * Nkv_pad * 4 + 2 * H * 4)
    vmem_limit = None
    if vmem_est > 24 * (1 << 20):
        vmem_limit = int(min(max(2 * vmem_est, 32 * (1 << 20)), 56 * (1 << 20)))

    out = pl.pallas_call(
        kernel,
        out_shape=jax.ShapeDtypeStruct((B, S_pad, H), dtype),
        grid_spec=pltpu.PrefetchScalarGridSpec(
            num_scalar_prefetch=0,
            grid=grid,
            in_specs=[
                pl.BlockSpec((1, nh, TS, hd), lambda b, s: (b, 0, s, 0)),   # x
                pl.BlockSpec((nh, Nkv_pad, hd), lambda b, s: (0, 0, 0)),    # key params
                pl.BlockSpec((nh, Nkv_pad, hd), lambda b, s: (0, 0, 0)),    # value params
                pl.BlockSpec((1, 1, Nkv_pad), lambda b, s: (b, 0, 0)),      # mask
                pl.BlockSpec((nh, hd, H), lambda b, s: (0, 0, 0)),          # o_proj W.T (split)
                pl.BlockSpec((1, H), lambda b, s: (0, 0)),                  # o_proj bias
            ],
            out_specs=pl.BlockSpec((1, TS, H), lambda b, s: (b, s, 0)),
        ),
        compiler_params=pltpu.CompilerParams(
            dimension_semantics=("parallel", "parallel"),
            vmem_limit_bytes=vmem_limit),
        cost_estimate=cost,
    )(x_heads, kp, vp, mask3, w2, bias2)

    if S_pad > S:
        out = out[:, :S, :]
    return out


def reference_forward(hidden_states, attention_mask, params, *, num_heads):
    """Pure-JAX reference mirroring the PyTorch module (for verification)."""
    B, S, H = hidden_states.shape
    hd = H // num_heads
    k = params["key_parameter_embeddings"]
    v = params["value_parameter_embeddings"]
    Nkv = k.shape[0]
    q = hidden_states.reshape(B, S, num_heads, hd).transpose(0, 2, 1, 3)
    kb = jnp.broadcast_to(k, (B, Nkv, H)).reshape(B, Nkv, num_heads, hd).transpose(0, 2, 1, 3)
    vb = jnp.broadcast_to(v, (B, Nkv, H)).reshape(B, Nkv, num_heads, hd).transpose(0, 2, 1, 3)
    scores = jnp.einsum("bhsd,bhkd->bhsk", q, kb) / jnp.sqrt(jnp.float32(hd))
    if attention_mask is not None:
        m = attention_mask[:, None, None, :]
        L = m.shape[-1]
        if L < Nkv:
            m = jnp.pad(m, ((0, 0), (0, 0), (0, 0), (0, Nkv - L)),
                        constant_values=float("-inf"))
        elif L > Nkv:
            m = m[..., :Nkv]
        scores = scores + m
    w = jax.nn.softmax(scores.astype(jnp.float32), axis=-1).astype(scores.dtype)
    out = jnp.einsum("bhsk,bhkd->bhsd", w, vb)
    out = out.transpose(0, 2, 1, 3).reshape(B, S, H)
    return out @ params["o_proj_weight"].T + params["o_proj_bias"]


if __name__ == "__main__":
    # Small, deterministic config consistent with the module.
    B, S, H = 2, 8, 32
    num_heads = 4
    num_query_parameter_tokens = 4      # defined but unused in forward (matches PyTorch)
    num_key_value_parameter_tokens = 8

    key = jax.random.PRNGKey(0)
    k0, k1, k2, k3, k4, k5 = jax.random.split(key, 6)

    params = {
        # query_parameter_embeddings is never consumed in forward (as in PyTorch)
        "query_parameter_embeddings": jax.random.normal(
            k0, (num_query_parameter_tokens, H), jnp.float32),
        "key_parameter_embeddings": jax.random.normal(
            k1, (num_key_value_parameter_tokens, H), jnp.float32),
        "value_parameter_embeddings": jax.random.normal(
            k2, (num_key_value_parameter_tokens, H), jnp.float32),
        # xavier_uniform for o_proj weight, zeros for bias
        "o_proj_weight": jax.random.uniform(
            k3, (H, H), jnp.float32,
            minval=-float(np.sqrt(6.0 / (H + H))),
            maxval=float(np.sqrt(6.0 / (H + H)))),
        "o_proj_bias": jnp.zeros((H,), jnp.float32),
    }

    hidden_states = jax.random.normal(k4, (B, S, H), jnp.float32)
    # Additive attention mask of length S (== Nkv here), small finite values.
    attention_mask = 0.1 * jax.random.normal(k5, (B, S), jnp.float32)
    position_ids = jnp.arange(S)[None, :].repeat(B, axis=0)  # unused (as in PyTorch)

    out = scalable_tokenized_attention(
        hidden_states, attention_mask, params, num_heads=num_heads)
    out = jax.block_until_ready(out)

    ref = reference_forward(
        hidden_states, attention_mask, params, num_heads=num_heads)
    # Tolerance covers the approximate (EUP) reciprocal used for the softmax
    # denominator (~2^-12 relative); structural bugs would be O(1) errors.
    np.testing.assert_allclose(np.asarray(out), np.asarray(ref),
                               rtol=5e-3, atol=5e-3)

    print("KERNEL_OK")
</pallas_src>

<mosaic_0001>
module attributes {stable_mosaic.version = 11 : i64} {
  func.func @attn_kernel(%arg0: i32, %arg1: i32, %arg2: memref<1x4x8x8xf32, #tpu.memory_space<vmem>>, %arg3: memref<4x128x8xf32, #tpu.memory_space<vmem>>, %arg4: memref<4x128x8xf32, #tpu.memory_space<vmem>>, %arg5: memref<1x1x128xf32, #tpu.memory_space<vmem>>, %arg6: memref<4x8x32xf32, #tpu.memory_space<vmem>>, %arg7: memref<1x32xf32, #tpu.memory_space<vmem>>, %arg8: memref<1x8x32xf32, #tpu.memory_space<vmem>>) attributes {dimension_semantics = [#tpu.dimension_semantics<parallel>, #tpu.dimension_semantics<parallel>], iteration_bounds = array<i64: 2, 1>, scalar_prefetch = 0 : i64, scratch_operands = 0 : i64, tpu.core_type = #tpu.core_type<tc>, window_params = [{transform_indices = @transform_0, window_bounds = array<i64: 1, 4, 8, 8>}, {pipeline_mode = #tpu.pipeline_mode<synchronous>, transform_indices = @transform_1, window_bounds = array<i64: 4, 128, 8>}, {pipeline_mode = #tpu.pipeline_mode<synchronous>, transform_indices = @transform_2, window_bounds = array<i64: 4, 128, 8>}, {transform_indices = @transform_3, window_bounds = array<i64: 1, 1, 128>}, {pipeline_mode = #tpu.pipeline_mode<synchronous>, transform_indices = @transform_4, window_bounds = array<i64: 4, 8, 32>}, {pipeline_mode = #tpu.pipeline_mode<synchronous>, transform_indices = @transform_5, window_bounds = array<i64: 1, 32>}, {transform_indices = @transform_6, window_bounds = array<i64: 1, 8, 32>}]} {
    %c0 = arith.constant 0 : index
    %c0_0 = arith.constant 0 : index
    %c0_1 = arith.constant 0 : index
    %c0_2 = arith.constant 0 : index
    %0 = vector.load %arg2[%c0, %c0_0, %c0_1, %c0_2] : memref<1x4x8x8xf32, #tpu.memory_space<vmem>>, vector<1x4x8x8xf32>
    %1 = vector.shape_cast %0 : vector<1x4x8x8xf32> to vector<4x8x8xf32>
    %c0_3 = arith.constant 0 : index
    %c0_4 = arith.constant 0 : index
    %c0_5 = arith.constant 0 : index
    %2 = vector.load %arg3[%c0_3, %c0_4, %c0_5] : memref<4x128x8xf32, #tpu.memory_space<vmem>>, vector<4x128x8xf32>
    %c0_6 = arith.constant 0 : index
    %c0_7 = arith.constant 0 : index
    %c0_8 = arith.constant 0 : index
    %3 = vector.load %arg4[%c0_6, %c0_7, %c0_8] : memref<4x128x8xf32, #tpu.memory_space<vmem>>, vector<4x128x8xf32>
    %c0_9 = arith.constant 0 : index
    %c0_10 = arith.constant 0 : index
    %c0_11 = arith.constant 0 : index
    %4 = vector.load %arg5[%c0_9, %c0_10, %c0_11] : memref<1x1x128xf32, #tpu.memory_space<vmem>>, vector<1x1x128xf32>
    "tpu.trace_start"() <{level = 10 : i32, message = "htd,hkd->htk"}> : () -> ()
    %cst = arith.constant dense<0.000000e+00> : vector<4x8x128xf32>
    %5 = tpu.matmul %1, %2, %cst {dimension_numbers = #tpu.dot_dimension_numbers<[2], [2], [1], [1], [0, 0, 0, 1, 1, 1], [0], [0]>} : vector<4x8x8xf32>, vector<4x128x8xf32>, vector<4x8x128xf32> -> vector<4x8x128xf32>
    "tpu.trace_stop"() : () -> ()
    %cst_12 = arith.constant 0.353553385 : f32
    %6 = vector.broadcast %cst_12 : f32 to vector<4x8x128xf32>
    %7 = arith.mulf %5, %6 : vector<4x8x128xf32>
    %8 = vector.broadcast %4 : vector<1x1x128xf32> to vector<4x8x128xf32>
    %9 = arith.addf %7, %8 : vector<4x8x128xf32>
    %cst_13 = arith.constant dense<0xFF800000> : vector<4x8xf32>
    %10 = vector.multi_reduction <maximumf>, %9, %cst_13 [2] : vector<4x8x128xf32> to vector<4x8xf32>
    %11 = vector.shape_cast %10 : vector<4x8xf32> to vector<4x8x1xf32>
    %12 = vector.broadcast %11 : vector<4x8x1xf32> to vector<4x8x128xf32>
    %13 = arith.subf %9, %12 : vector<4x8x128xf32>
    %14 = math.exp %13 : vector<4x8x128xf32>
    %cst_14 = arith.constant dense<0.000000e+00> : vector<4x8xf32>
    %15 = vector.multi_reduction <add>, %14, %cst_14 [2] : vector<4x8x128xf32> to vector<4x8xf32>
    %16 = vector.shape_cast %15 : vector<4x8xf32> to vector<4x8x1xf32>
    %17 = tpu.reciprocal %16 {approx = true} : vector<4x8x1xf32> -> vector<4x8x1xf32>
    %18 = vector.broadcast %17 : vector<4x8x1xf32> to vector<4x8x128xf32>
    %19 = arith.mulf %14, %18 : vector<4x8x128xf32>
    "tpu.trace_start"() <{level = 10 : i32, message = "htk,hkd->htd"}> : () -> ()
    %cst_15 = arith.constant dense<0.000000e+00> : vector<4x8x8xf32>
    %20 = tpu.matmul %19, %3, %cst_15 {dimension_numbers = #tpu.dot_dimension_numbers<[2], [1], [1], [2], [0, 0, 0, 1, 1, 2], [0], [0]>} : vector<4x8x128xf32>, vector<4x128x8xf32>, vector<4x8x8xf32> -> vector<4x8x8xf32>
    "tpu.trace_stop"() : () -> ()
    %21 = vector.extract_strided_slice %20 {offsets = [0, 0, 0], sizes = [1, 8, 8], strides = [1, 1, 1]} : vector<4x8x8xf32> to vector<1x8x8xf32>
    %22 = vector.shape_cast %21 : vector<1x8x8xf32> to vector<8x8xf32>
    %c0_16 = arith.constant 0 : index
    %c0_17 = arith.constant 0 : index
    %c0_18 = arith.constant 0 : index
    %23 = vector.load %arg6[%c0_16, %c0_17, %c0_18] : memref<4x8x32xf32, #tpu.memory_space<vmem>>, vector<1x8x32xf32>
    %24 = vector.shape_cast %23 : vector<1x8x32xf32> to vector<8x32xf32>
    %cst_19 = arith.constant dense<0.000000e+00> : vector<8x32xf32>
    %25 = tpu.matmul %22, %24, %cst_19 {dimension_numbers = #tpu.dot_dimension_numbers<[1], [0], [0], [1], [0, 0, 1, 1], [], []>} : vector<8x8xf32>, vector<8x32xf32>, vector<8x32xf32> -> vector<8x32xf32>
    %26 = vector.extract_strided_slice %20 {offsets = [1, 0, 0], sizes = [1, 8, 8], strides = [1, 1, 1]} : vector<4x8x8xf32> to vector<1x8x8xf32>
    %27 = vector.shape_cast %26 : vector<1x8x8xf32> to vector<8x8xf32>
    %c1 = arith.constant 1 : index
    %c0_20 = arith.constant 0 : index
    %c0_21 = arith.constant 0 : index
    %28 = vector.load %arg6[%c1, %c0_20, %c0_21] : memref<4x8x32xf32, #tpu.memory_space<vmem>>, vector<1x8x32xf32>
    %29 = vector.shape_cast %28 : vector<1x8x32xf32> to vector<8x32xf32>
    %cst_22 = arith.constant dense<0.000000e+00> : vector<8x32xf32>
    %30 = tpu.matmul %27, %29, %cst_22 {dimension_numbers = #tpu.dot_dimension_numbers<[1], [0], [0], [1], [0, 0, 1, 1], [], []>} : vector<8x8xf32>, vector<8x32xf32>, vector<8x32xf32> -> vector<8x32xf32>
    %31 = arith.addf %25, %30 : vector<8x32xf32>
    %32 = vector.extract_strided_slice %20 {offsets = [2, 0, 0], sizes = [1, 8, 8], strides = [1, 1, 1]} : vector<4x8x8xf32> to vector<1x8x8xf32>
    %33 = vector.shape_cast %32 : vector<1x8x8xf32> to vector<8x8xf32>
    %c2 = arith.constant 2 : index
    %c0_23 = arith.constant 0 : index
    %c0_24 = arith.constant 0 : index
    %34 = vector.load %arg6[%c2, %c0_23, %c0_24] : memref<4x8x32xf32, #tpu.memory_space<vmem>>, vector<1x8x32xf32>
    %35 = vector.shape_cast %34 : vector<1x8x32xf32> to vector<8x32xf32>
    %cst_25 = arith.constant dense<0.000000e+00> : vector<8x32xf32>
    %36 = tpu.matmul %33, %35, %cst_25 {dimension_numbers = #tpu.dot_dimension_numbers<[1], [0], [0], [1], [0, 0, 1, 1], [], []>} : vector<8x8xf32>, vector<8x32xf32>, vector<8x32xf32> -> vector<8x32xf32>
    %37 = arith.addf %31, %36 : vector<8x32xf32>
    %38 = vector.extract_strided_slice %20 {offsets = [3, 0, 0], sizes = [1, 8, 8], strides = [1, 1, 1]} : vector<4x8x8xf32> to vector<1x8x8xf32>
    %39 = vector.shape_cast %38 : vector<1x8x8xf32> to vector<8x8xf32>
    %c3 = arith.constant 3 : index
    %c0_26 = arith.constant 0 : index
    %c0_27 = arith.constant 0 : index
    %40 = vector.load %arg6[%c3, %c0_26, %c0_27] : memref<4x8x32xf32, #tpu.memory_space<vmem>>, vector<1x8x32xf32>
    %41 = vector.shape_cast %40 : vector<1x8x32xf32> to vector<8x32xf32>
    %cst_28 = arith.constant dense<0.000000e+00> : vector<8x32xf32>
    %42 = tpu.matmul %39, %41, %cst_28 {dimension_numbers = #tpu.dot_dimension_numbers<[1], [0], [0], [1], [0, 0, 1, 1], [], []>} : vector<8x8xf32>, vector<8x32xf32>, vector<8x32xf32> -> vector<8x32xf32>
    %43 = arith.addf %37, %42 : vector<8x32xf32>
    %c0_29 = arith.constant 0 : index
    %c0_30 = arith.constant 0 : index
    %44 = vector.load %arg7[%c0_29, %c0_30] : memref<1x32xf32, #tpu.memory_space<vmem>>, vector<1x32xf32>
    %45 = vector.broadcast %44 : vector<1x32xf32> to vector<8x32xf32>
    %46 = arith.addf %43, %45 : vector<8x32xf32>
    %c0_31 = arith.constant 0 : index
    %c0_32 = arith.constant 0 : index
    %c0_33 = arith.constant 0 : index
    %47 = vector.load %arg8[%c0_31, %c0_32, %c0_33] : memref<1x8x32xf32, #tpu.memory_space<vmem>>, vector<1x8x32xf32>
    %48 = vector.shape_cast %47 : vector<1x8x32xf32> to vector<8x32xf32>
    %49 = vector.shape_cast %46 : vector<8x32xf32> to vector<1x8x32xf32>
    tpu.vector_store %arg8[%c0_31, %c0_32, %c0_33], %49 {strides = array<i32>} : memref<1x8x32xf32, #tpu.memory_space<vmem>>, vector<1x8x32xf32>,
    return
  }
  func.func @transform_0(%arg0: i32, %arg1: i32) -> (i32, i32, i32, i32) {
    %c0_i32 = arith.constant 0 : i32
    %c0_i32_0 = arith.constant 0 : i32
    %c0_i32_1 = arith.constant 0 : i32
    return %arg0, %c0_i32, %arg1, %c0_i32_0 : i32, i32, i32, i32
  }
  func.func @transform_1(%arg0: i32, %arg1: i32) -> (i32, i32, i32) {
    %c0_i32 = arith.constant 0 : i32
    %c0_i32_0 = arith.constant 0 : i32
    %c0_i32_1 = arith.constant 0 : i32
    %c0_i32_2 = arith.constant 0 : i32
    return %c0_i32, %c0_i32_0, %c0_i32_1 : i32, i32, i32
  }
  func.func @transform_2(%arg0: i32, %arg1: i32) -> (i32, i32, i32) {
    %c0_i32 = arith.constant 0 : i32
    %c0_i32_0 = arith.constant 0 : i32
    %c0_i32_1 = arith.constant 0 : i32
    %c0_i32_2 = arith.constant 0 : i32
    return %c0_i32, %c0_i32_0, %c0_i32_1 : i32, i32, i32
  }
  func.func @transform_3(%arg0: i32, %arg1: i32) -> (i32, i32, i32) {
    %c0_i32 = arith.constant 0 : i32
    %c0_i32_0 = arith.constant 0 : i32
    %c0_i32_1 = arith.constant 0 : i32
    return %arg0, %c0_i32, %c0_i32_0 : i32, i32, i32
  }
  func.func @transform_4(%arg0: i32, %arg1: i32) -> (i32, i32, i32) {
    %c0_i32 = arith.constant 0 : i32
    %c0_i32_0 = arith.constant 0 : i32
    %c0_i32_1 = arith.constant 0 : i32
    %c0_i32_2 = arith.constant 0 : i32
    return %c0_i32, %c0_i32_0, %c0_i32_1 : i32, i32, i32
  }
  func.func @transform_5(%arg0: i32, %arg1: i32) -> (i32, i32) {
    %c0_i32 = arith.constant 0 : i32
    %c0_i32_0 = arith.constant 0 : i32
    %c0_i32_1 = arith.constant 0 : i32
    return %c0_i32, %c0_i32_0 : i32, i32
  }
  func.func @transform_6(%arg0: i32, %arg1: i32) -> (i32, i32, i32) {
    %c0_i32 = arith.constant 0 : i32
    %c0_i32_0 = arith.constant 0 : i32
    return %arg0, %arg1, %c0_i32 : i32, i32, i32
  }
}

</mosaic_0001>

<llo_original>
// kernel: tpu_custom_call.1
$region0: #{tpu_custom_call.1}
  #allocation0 [shape = 'u32[]', space=smem, size = 0x4, offset = 0x4, fixed_abs, tag = 'smem constant byte address 0x4 - core index']
  #allocation1 [shape = 'u32[144,128]{1,0:T(1,128)}', space=vmem, size = 0x12000, scoped, tag = 'internal scratch']
  %s0 = inlined_call_operand.vmem [shape: f32[2,4,8,8], index: 0, kind: input, shape index: {}]
  %s1 = inlined_call_operand.vmem [shape: f32[4,128,8], index: 1, kind: input, shape index: {}]
  %s2 = inlined_call_operand.vmem [shape: f32[4,128,8], index: 2, kind: input, shape index: {}]
  %s3 = inlined_call_operand.vmem [shape: f32[2,1,128], index: 3, kind: input, shape index: {}]
  %s4 = inlined_call_operand.vmem [shape: f32[4,8,32], index: 4, kind: input, shape index: {}]
  %s5 = inlined_call_operand.vmem [shape: f32[1,32], index: 5, kind: input, shape index: {}]
  %s6 = inlined_call_operand.hbm [shape: f32[2,8,32], index: 6, kind: output, shape index: {}]
  %s7 = sld [smem:[#allocation0]]
  $region57: #{tpu_custom_call.1} parent=0
    _
  %s9 = ssub.s32 1, %s7
  %s10 = scalar_select 0, %s9, %s7
  $region1: #{tpu_custom_call.1} parent=0
    #allocation2 [shape = 'u8[8192]{0}', space=vmem, size = 0x2000, scoped, tag = 'output window, operand 0']
    #allocation3 [shape = 's32[2]{0}', space=sflag, size = 0x8, scoped, tag = 'scoped memory for tpu_custom_call.1']
    %11 = vsyncpa [#allocation3], 0
    %s12 = scalar_lea.sflag [#allocation3], 1
    %13 = vsyncpa %s12, 0
    loop: start=0, step=1, limit=4
    $region2: #{tpu_custom_call.1} parent=1 // loop_pre_header
      _
    $region3: #{tpu_custom_call.1} parent=1 // loop_header
      %s15 = sphi 0, %s19
      %p16 = scmp.ge.s32.totalorder %s15, 4
      %s22 = sphi 0, %s34
      %s23 = sphi 0, %s30
      %s24 = sphi 0, %s22
      %s25 = sphi 0, %s23
      %s26 = sphi 0, %s24
      %s27 = sphi 0, %s25
      %s39 = sphi 0, %s41
      %s42 = sphi 0, %s39
      %s43 = sphi 0, %s42
      %s59 = sphi 0, %s43
      %s63 = sphi 0, %s63
      %s65 = sphi 0, %s63
      %s66 = sphi 0, %s65
      %s80 = sphi 0, %s66
      %s84 = sphi 0, %s84
      %s86 = sphi 0, %s84
      %s87 = sphi 0, %s86
      %s101 = sphi 0, %s87
      %s107 = sphi 0, %s109
      %s110 = sphi 0, %s107
      %s111 = sphi 0, %s110
      %s127 = sphi 0, %s111
      %s131 = sphi 0, %s131
      %s133 = sphi 0, %s131
      %s134 = sphi 0, %s133
      %s148 = sphi 0, %s134
      %s152 = sphi 0, %s152
      %s154 = sphi 0, %s152
      %s155 = sphi 0, %s154
      %s169 = sphi 0, %s155
      %s177 = sphi 0, %s179
      %s180 = sphi 0, %s177
      %s181 = sphi 0, %s180
      %s197 = sphi 0, %s181
    $region4: #{tpu_custom_call.1} parent=1 // loop_header_branch
      %18 = sbr.rel (%p16) target = $region8
    $region5: #{tpu_custom_call.1} parent=1 // loop_body
      %s20 = ssub.s32 %s15, 1
      %s21 = ssub.s32 %s15, 2
      %s28 = sadd.s32 1, %s23
      %p29 = scmp.ge.s32.totalorder %s28, 1
      %s30 = scalar_select %p29, 0, %s28
      %s31 = sadd.s32 1, %s22
      %s32 = scalar_select %p29, %s31, %s22
      %p33 = scmp.ge.s32.totalorder %s32, 2
      %s34 = scalar_select %p33, 0, %s32
      %s35 = ssub.s32 %s22, %s34
      %s36 = ssub.s32 %s23, %s30
      %s37 = sor.u32 %s35, %s36
      %p38 = scmp.eq.s32.totalorder %s37, 0
      %s40 = sadd.s32 %s39, 1
      %s41 = scalar_select %p38, %s39, %s40
      %p44 = pneg %p38
      %p45 = scmp.eq.s32.totalorder %s15, 1
      %p46 = por %p44, %p45
      %p47 = scmp.ne.s32.totalorder %s39, %s42
      %p48 = scmp.eq.s32.totalorder %s15, 0
      %p49 = por %p47, %p48
      %p50 = scmp.ne.s32.totalorder %s39, %s42
      %p51 = scmp.eq.s32.totalorder %s20, 1
      %p52 = por %p50, %p51
      %p53 = scmp.ne.s32.totalorder %s42, %s43
      %p54 = scmp.eq.s32.totalorder %s20, 0
      %p55 = por %p53, %p54
      %p56 = scmp.ne.s32.totalorder %s42, %s43
      %p57 = scmp.eq.s32.totalorder %s21, 1
      %p58 = por %p56, %p57
      %p60 = scmp.ne.s32.totalorder %s43, %s59
      %p61 = scmp.eq.s32.totalorder %s21, 0
      %p62 = por %p60, %p61
      %s64 = sadd.s32 %s63, 1
      %p67 = scmp.eq.s32.totalorder %s15, 1
      %p68 = scmp.ne.s32.totalorder %s63, %s65
      %p69 = scmp.eq.s32.totalorder %s15, 0
      %p70 = por %p68, %p69
      %p71 = scmp.ne.s32.totalorder %s63, %s65
      %p72 = scmp.eq.s32.totalorder %s20, 1
      %p73 = por %p71, %p72
      %p74 = scmp.ne.s32.totalorder %s65, %s66
      %p75 = scmp.eq.s32.totalorder %s20, 0
      %p76 = por %p74, %p75
      %p77 = scmp.ne.s32.totalorder %s65, %s66
      %p78 = scmp.eq.s32.totalorder %s21, 1
      %p79 = por %p77, %p78
      %p81 = scmp.ne.s32.totalorder %s66, %s80
      %p82 = scmp.eq.s32.totalorder %s21, 0
      %p83 = por %p81, %p82
      %s85 = sadd.s32 %s84, 1
      %p88 = scmp.eq.s32.totalorder %s15, 1
      %p89 = scmp.ne.s32.totalorder %s84, %s86
      %p90 = scmp.eq.s32.totalorder %s15, 0
      %p91 = por %p89, %p90
      %p92 = scmp.ne.s32.totalorder %s84, %s86
      %p93 = scmp.eq.s32.totalorder %s20, 1
      %p94 = por %p92, %p93
      %p95 = scmp.ne.s32.totalorder %s86, %s87
      %p96 = scmp.eq.s32.totalorder %s20, 0
      %p97 = por %p95, %p96
      %p98 = scmp.ne.s32.totalorder %s86, %s87
      %p99 = scmp.eq.s32.totalorder %s21, 1
      %p100 = por %p98, %p99
      %p102 = scmp.ne.s32.totalorder %s87, %s101
      %p103 = scmp.eq.s32.totalorder %s21, 0
      %p104 = por %p102, %p103
      %s105 = ssub.s32 %s22, %s34
      %p106 = scmp.eq.s32.totalorder %s105, 0
      %s108 = sadd.s32 %s107, 1
      %s109 = scalar_select %p106, %s107, %s108
      %p112 = pneg %p106
      %p113 = scmp.eq.s32.totalorder %s15, 1
      %p114 = por %p112, %p113
      %p115 = scmp.ne.s32.totalorder %s107, %s110
      %p116 = scmp.eq.s32.totalorder %s15, 0
      %p117 = por %p115, %p116
      %p118 = scmp.ne.s32.totalorder %s107, %s110
      %p119 = scmp.eq.s32.totalorder %s20, 1
      %p120 = por %p118, %p119
      %p121 = scmp.ne.s32.totalorder %s110, %s111
      %p122 = scmp.eq.s32.totalorder %s20, 0
      %p123 = por %p121, %p122
      %p124 = scmp.ne.s32.totalorder %s110, %s111
      %p125 = scmp.eq.s32.totalorder %s21, 1
      %p126 = por %p124, %p125
      %p128 = scmp.ne.s32.totalorder %s111, %s127
      %p129 = scmp.eq.s32.totalorder %s21, 0
      %p130 = por %p128, %p129
      %s132 = sadd.s32 %s131, 1
      %p135 = scmp.eq.s32.totalorder %s15, 1
      %p136 = scmp.ne.s32.totalorder %s131, %s133
      %p137 = scmp.eq.s32.totalorder %s15, 0
      %p138 = por %p136, %p137
      %p139 = scmp.ne.s32.totalorder %s131, %s133
      %p140 = scmp.eq.s32.totalorder %s20, 1
      %p141 = por %p139, %p140
      %p142 = scmp.ne.s32.totalorder %s133, %s134
      %p143 = scmp.eq.s32.totalorder %s20, 0
      %p144 = por %p142, %p143
      %p145 = scmp.ne.s32.totalorder %s133, %s134
      %p146 = scmp.eq.s32.totalorder %s21, 1
      %p147 = por %p145, %p146
      %p149 = scmp.ne.s32.totalorder %s134, %s148
      %p150 = scmp.eq.s32.totalorder %s21, 0
      %p151 = por %p149, %p150
      %s153 = sadd.s32 %s152, 1
      %p156 = scmp.eq.s32.totalorder %s15, 1
      %p157 = scmp.ne.s32.totalorder %s152, %s154
      %p158 = scmp.eq.s32.totalorder %s15, 0
      %p159 = por %p157, %p158
      %p160 = scmp.ne.s32.totalorder %s152, %s154
      %p161 = scmp.eq.s32.totalorder %s20, 1
      %p162 = por %p160, %p161
      %p163 = scmp.ne.s32.totalorder %s154, %s155
      %p164 = scmp.eq.s32.totalorder %s20, 0
      %p165 = por %p163, %p164
      %p166 = scmp.ne.s32.totalorder %s154, %s155
      %p167 = scmp.eq.s32.totalorder %s21, 1
      %p168 = por %p166, %p167
      %p170 = scmp.ne.s32.totalorder %s155, %s169
      %p171 = scmp.eq.s32.totalorder %s21, 0
      %p172 = por %p170, %p171
      %s173 = ssub.s32 %s22, %s34
      %s174 = ssub.s32 %s23, %s30
      %s175 = sor.u32 %s173, %s174
      %p176 = scmp.eq.s32.totalorder %s175, 0
      %s178 = sadd.s32 %s177, 1
      %s179 = scalar_select %p176, %s177, %s178
      %p182 = pneg %p176
      %p183 = scmp.eq.s32.totalorder %s15, 1
      %p184 = por %p182, %p183
      %p185 = scmp.ne.s32.totalorder %s177, %s180
      %p186 = scmp.eq.s32.totalorder %s15, 0
      %p187 = por %p185, %p186
      %p188 = scmp.ne.s32.totalorder %s177, %s180
      %p189 = scmp.eq.s32.totalorder %s20, 1
      %p190 = por %p188, %p189
      %p191 = scmp.ne.s32.totalorder %s180, %s181
      %p192 = scmp.eq.s32.totalorder %s20, 0
      %p193 = por %p191, %p192
      %p194 = scmp.ne.s32.totalorder %s180, %s181
      %p195 = scmp.eq.s32.totalorder %s21, 1
      %p196 = por %p194, %p195
      %p198 = scmp.ne.s32.totalorder %s181, %s197
      %p199 = scmp.eq.s32.totalorder %s21, 0
      %p200 = por %p198, %p199
      %p201 = scmp.le.s32.totalorder 1, %s15
      %p202 = scmp.lt.s32.totalorder %s15, 3
      %p203 = pnand %p201, %p202
      %p204 = pneg %p203
      // Predicated region
      $region9: #{tpu_custom_call.1} parent=5 // pred_check
        _
      $region10: #{tpu_custom_call.1} parent=5 // pred_check_branch
        %206 = sbr.rel (%p203) target = $region12
      $region11: #{tpu_custom_call.1} parent=5 // pred_region
        %s207 = ssub.s32 %s15, 1
        // Predicated region
        $region13: #{tpu_custom_call.1} parent=11 // pred_check
          %p208 = pneg %p76
        $region14: #{tpu_custom_call.1} parent=11 // pred_check_branch
          %210 = sbr.rel (%p208) target = $region16
        $region15: #{tpu_custom_call.1} parent=11 // pred_region
          _
        $region16: #{tpu_custom_call.1} parent=11 // pred_fallthru
          _
        // Predicated region
        $region17: #{tpu_custom_call.1} parent=11 // pred_check
          %p211 = pneg %p97
        $region18: #{tpu_custom_call.1} parent=11 // pred_check_branch
          %213 = sbr.rel (%p211) target = $region20
        $region19: #{tpu_custom_call.1} parent=11 // pred_region
          _
        $region20: #{tpu_custom_call.1} parent=11 // pred_fallthru
          _
        // Predicated region
        $region21: #{tpu_custom_call.1} parent=11 // pred_check
          %p214 = pneg %p144
        $region22: #{tpu_custom_call.1} parent=11 // pred_check_branch
          %216 = sbr.rel (%p214) target = $region24
        $region23: #{tpu_custom_call.1} parent=11 // pred_region
          _
        $region24: #{tpu_custom_call.1} parent=11 // pred_fallthru
          _
        // Predicated region
        $region25: #{tpu_custom_call.1} parent=11 // pred_check
          %p217 = pneg %p165
        $region26: #{tpu_custom_call.1} parent=11 // pred_check_branch
          %219 = sbr.rel (%p217) target = $region28
        $region27: #{tpu_custom_call.1} parent=11 // pred_region
          _
        $region28: #{tpu_custom_call.1} parent=11 // pred_fallthru
          _
      $region12: #{tpu_custom_call.1} parent=5 // pred_fallthru
        _
      %p220 = scmp.lt.s32.totalorder %s15, 2
      // Predicated region
      $region29: #{tpu_custom_call.1} parent=5 // pred_check
        %p221 = pneg %p220
      $region30: #{tpu_custom_call.1} parent=5 // pred_check_branch
        %223 = sbr.rel (%p221) target = $region32
      $region31: #{tpu_custom_call.1} parent=5 // pred_region
        // Predicated region
        $region33: #{tpu_custom_call.1} parent=31 // pred_check
          %p224 = pneg %p49
        $region34: #{tpu_custom_call.1} parent=31 // pred_check_branch
          %226 = sbr.rel (%p224) target = $region36
        $region35: #{tpu_custom_call.1} parent=31 // pred_region
          %p227 = scmp.lt.s32.totalorder %s22, 1
          %s228 = scalar_select %p227, %s22, 1
          %p229 = scmp.lt.s32.totalorder %s23, 0
          %s230 = scalar_select %p229, %s23, 0
          %s231 = smul.addr %s228, 4
          %s232 = sadd.s32 %s230, %s231
          %s233 = smul.addr %s232, 8
          %s234 = scalar_lea.vmem %s0, %s233
        $region36: #{tpu_custom_call.1} parent=31 // pred_fallthru
          _
        // Predicated region
        $region37: #{tpu_custom_call.1} parent=31 // pred_check
          %p235 = pneg %p117
        $region38: #{tpu_custom_call.1} parent=31 // pred_check_branch
          %237 = sbr.rel (%p235) target = $region40
        $region39: #{tpu_custom_call.1} parent=31 // pred_region
          %p238 = scmp.lt.s32.totalorder %s22, 1
          %s239 = scalar_select %p238, %s22, 1
          %s240 = scalar_lea.vmem %s3, %s239
        $region40: #{tpu_custom_call.1} parent=31 // pred_fallthru
          _
      $region32: #{tpu_custom_call.1} parent=5 // pred_fallthru
        _
      %p241 = scmp.le.s32.totalorder 1, %s15
      %p242 = scmp.lt.s32.totalorder %s15, 3
      %p243 = pnand %p241, %p242
      %p244 = pneg %p243
      // Predicated region
      $region41: #{tpu_custom_call.1} parent=5 // pred_check
        _
      $region42: #{tpu_custom_call.1} parent=5 // pred_check_branch
        %246 = sbr.rel (%p243) target = $region44
      $region43: #{tpu_custom_call.1} parent=5 // pred_region
        %s247 = ssub.s32 %s15, 1
        %p248 = scmp.lt.s32.totalorder %s24, 1
        %s249 = scalar_select %p248, %s24, 1
        %p250 = scmp.lt.s32.totalorder %s25, 0
        %s251 = scalar_select %p250, %s25, 0
        %s252 = smul.addr %s249, 4
        %s253 = sadd.s32 %s251, %s252
        %s254 = smul.addr %s253, 8
        %s255 = scalar_lea.vmem %s0, %s254
        %p256 = pneg %p55
        %p257 = pneg %p52
        %p258 = pneg %p76
        %p259 = pneg %p73
        %p260 = pneg %p97
        %p261 = pneg %p94
        %p262 = scmp.lt.s32.totalorder %s24, 1
        %s263 = scalar_select %p262, %s24, 1
        %s264 = scalar_lea.vmem %s3, %s263
        %p265 = pneg %p123
        %p266 = pneg %p120
        %p267 = pneg %p144
        %p268 = pneg %p141
        %p269 = pneg %p165
        %p270 = pneg %p162
        %p271 = pneg %p193
        %p272 = pneg %p190
        %s273 = sand.u32 %s180, 1
        %s274 = scalar_lea.sflag [#allocation3], %s273
        %s275 = sand.u32 %s180, 1
        %s276 = smul.addr %s275, 8
        %s277 = scalar_lea.vmem [#allocation2], %s276
        %p278 = scmp.lt.s32.totalorder %s24, 1
        %s279 = scalar_select %p278, %s24, 1
        %p280 = scmp.lt.s32.totalorder %s25, 0
        %s281 = scalar_select %p280, %s25, 0
        %s282 = smul.addr %s279, 4
        %s283 = sadd.s32 %s281, %s282
        %s284 = smul.addr %s283, 8
        %s285 = scalar_lea.vmem %s0, %s284
        %p286 = scmp.lt.s32.totalorder %s24, 1
        %s287 = scalar_select %p286, %s24, 1
        %s288 = scalar_lea.vmem %s3, %s287
        %v289 = vld [vmem:[%s285] sm:$0xff]
        %v290 = vld [vmem:[%s285 + $0x8] sm:$0xff]
        %v291 = vld [vmem:[%s285 + $0x10] sm:$0xff]
        %v292 = vld [vmem:[%s285 + $0x18] sm:$0xff]
        %v293 = vld [vmem:[%s1] sm:$0xff]
        %v294 = vld [vmem:[%s1 + $0x8] sm:$0xff]
        %v295 = vld [vmem:[%s1 + $0x10] sm:$0xff]
        %v296 = vld [vmem:[%s1 + $0x18] sm:$0xff]
        %v297 = vld [vmem:[%s1 + $0x20] sm:$0xff]
        %v298 = vld [vmem:[%s1 + $0x28] sm:$0xff]
        %v299 = vld [vmem:[%s1 + $0x30] sm:$0xff]
        %v300 = vld [vmem:[%s1 + $0x38] sm:$0xff]
        %v301 = vld [vmem:[%s1 + $0x40] sm:$0xff]
        %v302 = vld [vmem:[%s1 + $0x48] sm:$0xff]
        %v303 = vld [vmem:[%s1 + $0x50] sm:$0xff]
        %v304 = vld [vmem:[%s1 + $0x58] sm:$0xff]
        %v305 = vld [vmem:[%s1 + $0x60] sm:$0xff]
        %v306 = vld [vmem:[%s1 + $0x68] sm:$0xff]
        %v307 = vld [vmem:[%s1 + $0x70] sm:$0xff]
        %v308 = vld [vmem:[%s1 + $0x78] sm:$0xff]
        %v309 = vld [vmem:[%s1 + $0x80] sm:$0xff]
        %v310 = vld [vmem:[%s1 + $0x88] sm:$0xff]
        %v311 = vld [vmem:[%s1 + $0x90] sm:$0xff]
        %v312 = vld [vmem:[%s1 + $0x98] sm:$0xff]
        %v313 = vld [vmem:[%s1 + $0xa0] sm:$0xff]
        %v314 = vld [vmem:[%s1 + $0xa8] sm:$0xff]
        %v315 = vld [vmem:[%s1 + $0xb0] sm:$0xff]
        %v316 = vld [vmem:[%s1 + $0xb8] sm:$0xff]
        %v317 = vld [vmem:[%s1 + $0xc0] sm:$0xff]
        %v318 = vld [vmem:[%s1 + $0xc8] sm:$0xff]
        %v319 = vld [vmem:[%s1 + $0xd0] sm:$0xff]
        %v320 = vld [vmem:[%s1 + $0xd8] sm:$0xff]
        %v321 = vld [vmem:[%s1 + $0xe0] sm:$0xff]
        %v322 = vld [vmem:[%s1 + $0xe8] sm:$0xff]
        %v323 = vld [vmem:[%s1 + $0xf0] sm:$0xff]
        %v324 = vld [vmem:[%s1 + $0xf8] sm:$0xff]
        %v325 = vld [vmem:[%s1 + $0x100] sm:$0xff]
        %v326 = vld [vmem:[%s1 + $0x108] sm:$0xff]
        %v327 = vld [vmem:[%s1 + $0x110] sm:$0xff]
        %v328 = vld [vmem:[%s1 + $0x118] sm:$0xff]
        %v329 = vld [vmem:[%s1 + $0x120] sm:$0xff]
        %v330 = vld [vmem:[%s1 + $0x128] sm:$0xff]
        %v331 = vld [vmem:[%s1 + $0x130] sm:$0xff]
        %v332 = vld [vmem:[%s1 + $0x138] sm:$0xff]
        %v333 = vld [vmem:[%s1 + $0x140] sm:$0xff]
        %v334 = vld [vmem:[%s1 + $0x148] sm:$0xff]
        %v335 = vld [vmem:[%s1 + $0x150] sm:$0xff]
        %v336 = vld [vmem:[%s1 + $0x158] sm:$0xff]
        %v337 = vld [vmem:[%s1 + $0x160] sm:$0xff]
        %v338 = vld [vmem:[%s1 + $0x168] sm:$0xff]
        %v339 = vld [vmem:[%s1 + $0x170] sm:$0xff]
        %v340 = vld [vmem:[%s1 + $0x178] sm:$0xff]
        %v341 = vld [vmem:[%s1 + $0x180] sm:$0xff]
        %v342 = vld [vmem:[%s1 + $0x188] sm:$0xff]
        %v343 = vld [vmem:[%s1 + $0x190] sm:$0xff]
        %v344 = vld [vmem:[%s1 + $0x198] sm:$0xff]
        %v345 = vld [vmem:[%s1 + $0x1a0] sm:$0xff]
        %v346 = vld [vmem:[%s1 + $0x1a8] sm:$0xff]
        %v347 = vld [vmem:[%s1 + $0x1b0] sm:$0xff]
        %v348 = vld [vmem:[%s1 + $0x1b8] sm:$0xff]
        %v349 = vld [vmem:[%s1 + $0x1c0] sm:$0xff]
        %v350 = vld [vmem:[%s1 + $0x1c8] sm:$0xff]
        %v351 = vld [vmem:[%s1 + $0x1d0] sm:$0xff]
        %v352 = vld [vmem:[%s1 + $0x1d8] sm:$0xff]
        %v353 = vld [vmem:[%s1 + $0x1e0] sm:$0xff]
        %v354 = vld [vmem:[%s1 + $0x1e8] sm:$0xff]
        %v355 = vld [vmem:[%s1 + $0x1f0] sm:$0xff]
        %v356 = vld [vmem:[%s1 + $0x1f8] sm:$0xff]
        %v357 = vld [vmem:[%s2] sm:$0xff]
        %v358 = vld [vmem:[%s2 + $0x8] sm:$0xff]
        %v359 = vld [vmem:[%s2 + $0x10] sm:$0xff]
        %v360 = vld [vmem:[%s2 + $0x18] sm:$0xff]
        %v361 = vld [vmem:[%s2 + $0x20] sm:$0xff]
        %v362 = vld [vmem:[%s2 + $0x28] sm:$0xff]
        %v363 = vld [vmem:[%s2 + $0x30] sm:$0xff]
        %v364 = vld [vmem:[%s2 + $0x38] sm:$0xff]
        %v365 = vld [vmem:[%s2 + $0x40] sm:$0xff]
        %v366 = vld [vmem:[%s2 + $0x48] sm:$0xff]
        %v367 = vld [vmem:[%s2 + $0x50] sm:$0xff]
        %v368 = vld [vmem:[%s2 + $0x58] sm:$0xff]
        %v369 = vld [vmem:[%s2 + $0x60] sm:$0xff]
        %v370 = vld [vmem:[%s2 + $0x68] sm:$0xff]
        %v371 = vld [vmem:[%s2 + $0x70] sm:$0xff]
        %v372 = vld [vmem:[%s2 + $0x78] sm:$0xff]
        %v373 = vld [vmem:[%s2 + $0x80] sm:$0xff]
        %v374 = vld [vmem:[%s2 + $0x88] sm:$0xff]
        %v375 = vld [vmem:[%s2 + $0x90] sm:$0xff]
        %v376 = vld [vmem:[%s2 + $0x98] sm:$0xff]
        %v377 = vld [vmem:[%s2 + $0xa0] sm:$0xff]
        %v378 = vld [vmem:[%s2 + $0xa8] sm:$0xff]
        %v379 = vld [vmem:[%s2 + $0xb0] sm:$0xff]
        %v380 = vld [vmem:[%s2 + $0xb8] sm:$0xff]
        %v381 = vld [vmem:[%s2 + $0xc0] sm:$0xff]
        %v382 = vld [vmem:[%s2 + $0xc8] sm:$0xff]
        %v383 = vld [vmem:[%s2 + $0xd0] sm:$0xff]
        %v384 = vld [vmem:[%s2 + $0xd8] sm:$0xff]
        %v385 = vld [vmem:[%s2 + $0xe0] sm:$0xff]
        %v386 = vld [vmem:[%s2 + $0xe8] sm:$0xff]
        %v387 = vld [vmem:[%s2 + $0xf0] sm:$0xff]
        %v388 = vld [vmem:[%s2 + $0xf8] sm:$0xff]
        %v389 = vld [vmem:[%s2 + $0x100] sm:$0xff]
        %v390 = vld [vmem:[%s2 + $0x108] sm:$0xff]
        %v391 = vld [vmem:[%s2 + $0x110] sm:$0xff]
        %v392 = vld [vmem:[%s2 + $0x118] sm:$0xff]
        %v393 = vld [vmem:[%s2 + $0x120] sm:$0xff]
        %v394 = vld [vmem:[%s2 + $0x128] sm:$0xff]
        %v395 = vld [vmem:[%s2 + $0x130] sm:$0xff]
        %v396 = vld [vmem:[%s2 + $0x138] sm:$0xff]
        %v397 = vld [vmem:[%s2 + $0x140] sm:$0xff]
        %v398 = vld [vmem:[%s2 + $0x148] sm:$0xff]
        %v399 = vld [vmem:[%s2 + $0x150] sm:$0xff]
        %v400 = vld [vmem:[%s2 + $0x158] sm:$0xff]
        %v401 = vld [vmem:[%s2 + $0x160] sm:$0xff]
        %v402 = vld [vmem:[%s2 + $0x168] sm:$0xff]
        %v403 = vld [vmem:[%s2 + $0x170] sm:$0xff]
        %v404 = vld [vmem:[%s2 + $0x178] sm:$0xff]
        %v405 = vld [vmem:[%s2 + $0x180] sm:$0xff]
        %v406 = vld [vmem:[%s2 + $0x188] sm:$0xff]
        %v407 = vld [vmem:[%s2 + $0x190] sm:$0xff]
        %v408 = vld [vmem:[%s2 + $0x198] sm:$0xff]
        %v409 = vld [vmem:[%s2 + $0x1a0] sm:$0xff]
        %v410 = vld [vmem:[%s2 + $0x1a8] sm:$0xff]
        %v411 = vld [vmem:[%s2 + $0x1b0] sm:$0xff]
        %v412 = vld [vmem:[%s2 + $0x1b8] sm:$0xff]
        %v413 = vld [vmem:[%s2 + $0x1c0] sm:$0xff]
        %v414 = vld [vmem:[%s2 + $0x1c8] sm:$0xff]
        %v415 = vld [vmem:[%s2 + $0x1d0] sm:$0xff]
        %v416 = vld [vmem:[%s2 + $0x1d8] sm:$0xff]
        %v417 = vld [vmem:[%s2 + $0x1e0] sm:$0xff]
        %v418 = vld [vmem:[%s2 + $0x1e8] sm:$0xff]
        %v419 = vld [vmem:[%s2 + $0x1f0] sm:$0xff]
        %v420 = vld [vmem:[%s2 + $0x1f8] sm:$0xff]
        %v421 = vld [vmem:[%s288] sm:$0x1]
        %vm422 = vcmask 64512
        %v424 = vsel %vm422, %v289, 0
        %v427 = vsel %vm422, %v293, 0
        %v430 = vsel %vm422, %v294, 0
        %v433 = vsel %vm422, %v295, 0
        %v436 = vsel %vm422, %v296, 0
        %v439 = vsel %vm422, %v297, 0
        %v442 = vsel %vm422, %v298, 0
        %v445 = vsel %vm422, %v299, 0
        %v448 = vsel %vm422, %v300, 0
        %v451 = vsel %vm422, %v301, 0
        %v454 = vsel %vm422, %v302, 0
        %v457 = vsel %vm422, %v303, 0
        %v460 = vsel %vm422, %v304, 0
        %v463 = vsel %vm422, %v305, 0
        %v466 = vsel %vm422, %v306, 0
        %v469 = vsel %vm422, %v307, 0
        %v472 = vsel %vm422, %v308, 0
        %474 = vmatprep.subr.mxu0 0.0
        %475 = vmatpush1.xpose.msra.mxu0 %v472
        %476 = vmatprep.subr.mxu0 0.0
        %477 = vmatpush1.xpose.msra.mxu0 %v469
        %478 = vmatprep.subr.mxu0 0.0
        %479 = vmatpush1.xpose.msra.mxu0 %v466
        %480 = vmatprep.subr.mxu0 0.0
        %481 = vmatpush1.xpose.msra.mxu0 %v463
        %482 = vmatprep.subr.mxu0 0.0
        %483 = vmatpush1.xpose.msra.mxu0 %v460
        %484 = vmatprep.subr.mxu0 0.0
        %485 = vmatpush1.xpose.msra.mxu0 %v457
        %486 = vmatprep.subr.mxu0 0.0
        %487 = vmatpush1.xpose.msra.mxu0 %v454
        %488 = vmatprep.subr.mxu0 0.0
        %489 = vmatpush1.xpose.msra.mxu0 %v451
        %490 = vmatprep.subr.mxu0 0.0
        %491 = vmatpush1.xpose.msra.mxu0 %v448
        %492 = vmatprep.subr.mxu0 0.0
        %493 = vmatpush1.xpose.msra.mxu0 %v445
        %494 = vmatprep.subr.mxu0 0.0
        %495 = vmatpush1.xpose.msra.mxu0 %v442
        %496 = vmatprep.subr.mxu0 0.0
        %497 = vmatpush1.xpose.msra.mxu0 %v439
        %498 = vmatprep.subr.mxu0 0.0
        %499 = vmatpush1.xpose.msra.mxu0 %v436
        %500 = vmatprep.subr.mxu0 0.0
        %501 = vmatpush1.xpose.msra.mxu0 %v433
        %502 = vmatprep.subr.mxu0 0.0
        %503 = vmatpush1.xpose.msra.mxu0 %v430
        %504 = vmatprep.subr.mxu0 0.0
        %505 = vmatpush1.xpose.msra.mxu0 %v427
        %506 = vmatprep.subr.mxu0 0.0
        %507 = vmatpush2.xpose.msra.mxu0 0.0
        %508 = vmatprep.subr.mxu0 0.0
        %509 = vmatpush2.xpose.msra.mxu0 0.0
        %510 = vmatprep.subr.mxu0 0.0
        %511 = vmatpush2.xpose.msra.mxu0 0.0
        %512 = vmatprep.subr.mxu0 0.0
        %513 = vmatpush2.xpose.msra.mxu0 0.0
        %514 = vmatprep.subr.mxu0 0.0
        %515 = vmatpush2.xpose.msra.mxu0 0.0
        %516 = vmatprep.subr.mxu0 0.0
        %517 = vmatpush2.xpose.msra.mxu0 0.0
        %518 = vmatprep.subr.mxu0 0.0
        %519 = vmatpush2.xpose.msra.mxu0 0.0
        %520 = vmatprep.subr.mxu0 0.0
        %521 = vmatpush2.xpose.msra.mxu0 0.0
        %522 = vmatprep.subr.mxu0 0.0
        %523 = vmatpush2.xpose.msra.mxu0 0.0
        %524 = vmatprep.subr.mxu0 0.0
        %525 = vmatpush2.xpose.msra.mxu0 0.0
        %526 = vmatprep.subr.mxu0 0.0
        %527 = vmatpush2.xpose.msra.mxu0 0.0
        %528 = vmatprep.subr.mxu0 0.0
        %529 = vmatpush2.xpose.msra.mxu0 0.0
        %530 = vmatprep.subr.mxu0 0.0
        %531 = vmatpush2.xpose.msra.mxu0 0.0
        %532 = vmatprep.subr.mxu0 0.0
        %533 = vmatpush2.xpose.msra.mxu0 0.0
        %534 = vmatprep.subr.mxu0 0.0
        %535 = vmatpush2.xpose.msra.mxu0 0.0
        %536 = vmatprep.subr.mxu0 0.0
        %537 = vmatpush2.xpose.msra.mxu0 0.0
        %538 = vmatprep.mubr.f32.mxu0 0.0
        %539 = vmatmul.mubr.f32.gmra.mxu0 %v424
        %v540 = vpop.f32.mrf.mxu0
        %v541 = vadd.f32 0.0, %v540
        %v542 = vpop.f32.mrf.mxu0
        %543 = vdwg.mxu0
        %v545 = vsel %vm422, %v290, 0
        %v548 = vsel %vm422, %v309, 0
        %v551 = vsel %vm422, %v310, 0
        %v554 = vsel %vm422, %v311, 0
        %v557 = vsel %vm422, %v312, 0
        %v560 = vsel %vm422, %v313, 0
        %v563 = vsel %vm422, %v314, 0
        %v566 = vsel %vm422, %v315, 0
        %v569 = vsel %vm422, %v316, 0
        %v572 = vsel %vm422, %v317, 0
        %v575 = vsel %vm422, %v318, 0
        %v578 = vsel %vm422, %v319, 0
        %v581 = vsel %vm422, %v320, 0
        %v584 = vsel %vm422, %v321, 0
        %v587 = vsel %vm422, %v322, 0
        %v590 = vsel %vm422, %v323, 0
        %v593 = vsel %vm422, %v324, 0
        %595 = vmatprep.subr.mxu0 0.0
        %596 = vmatpush1.xpose.msra.mxu0 %v593
        %597 = vmatprep.subr.mxu0 0.0
        %598 = vmatpush1.xpose.msra.mxu0 %v590
        %599 = vmatprep.subr.mxu0 0.0
        %600 = vmatpush1.xpose.msra.mxu0 %v587
        %601 = vmatprep.subr.mxu0 0.0
        %602 = vmatpush1.xpose.msra.mxu0 %v584
        %603 = vmatprep.subr.mxu0 0.0
        %604 = vmatpush1.xpose.msra.mxu0 %v581
        %605 = vmatprep.subr.mxu0 0.0
        %606 = vmatpush1.xpose.msra.mxu0 %v578
        %607 = vmatprep.subr.mxu0 0.0
        %608 = vmatpush1.xpose.msra.mxu0 %v575
        %609 = vmatprep.subr.mxu0 0.0
        %610 = vmatpush1.xpose.msra.mxu0 %v572
        %611 = vmatprep.subr.mxu0 0.0
        %612 = vmatpush1.xpose.msra.mxu0 %v569
        %613 = vmatprep.subr.mxu0 0.0
        %614 = vmatpush1.xpose.msra.mxu0 %v566
        %615 = vmatprep.subr.mxu0 0.0
        %616 = vmatpush1.xpose.msra.mxu0 %v563
        %617 = vmatprep.subr.mxu0 0.0
        %618 = vmatpush1.xpose.msra.mxu0 %v560
        %619 = vmatprep.subr.mxu0 0.0
        %620 = vmatpush1.xpose.msra.mxu0 %v557
        %621 = vmatprep.subr.mxu0 0.0
        %622 = vmatpush1.xpose.msra.mxu0 %v554
        %623 = vmatprep.subr.mxu0 0.0
        %624 = vmatpush1.xpose.msra.mxu0 %v551
        %625 = vmatprep.subr.mxu0 0.0
        %626 = vmatpush1.xpose.msra.mxu0 %v548
        %627 = vmatprep.subr.mxu0 0.0
        %628 = vmatpush2.xpose.msra.mxu0 0.0
        %629 = vmatprep.subr.mxu0 0.0
        %630 = vmatpush2.xpose.msra.mxu0 0.0
        %631 = vmatprep.subr.mxu0 0.0
        %632 = vmatpush2.xpose.msra.mxu0 0.0
        %633 = vmatprep.subr.mxu0 0.0
        %634 = vmatpush2.xpose.msra.mxu0 0.0
        %635 = vmatprep.subr.mxu0 0.0
        %636 = vmatpush2.xpose.msra.mxu0 0.0
        %637 = vmatprep.subr.mxu0 0.0
        %638 = vmatpush2.xpose.msra.mxu0 0.0
        %639 = vmatprep.subr.mxu0 0.0
        %640 = vmatpush2.xpose.msra.mxu0 0.0
        %641 = vmatprep.subr.mxu0 0.0
        %642 = vmatpush2.xpose.msra.mxu0 0.0
        %643 = vmatprep.subr.mxu0 0.0
        %644 = vmatpush2.xpose.msra.mxu0 0.0
        %645 = vmatprep.subr.mxu0 0.0
        %646 = vmatpush2.xpose.msra.mxu0 0.0
        %647 = vmatprep.subr.mxu0 0.0
        %648 = vmatpush2.xpose.msra.mxu0 0.0
        %649 = vmatprep.subr.mxu0 0.0
        %650 = vmatpush2.xpose.msra.mxu0 0.0
        %651 = vmatprep.subr.mxu0 0.0
        %652 = vmatpush2.xpose.msra.mxu0 0.0
        %653 = vmatprep.subr.mxu0 0.0
        %654 = vmatpush2.xpose.msra.mxu0 0.0
        %655 = vmatprep.subr.mxu0 0.0
        %656 = vmatpush2.xpose.msra.mxu0 0.0
        %657 = vmatprep.subr.mxu0 0.0
        %658 = vmatpush2.xpose.msra.mxu0 0.0
        %659 = vmatprep.mubr.f32.mxu0 0.0
        %660 = vmatmul.mubr.f32.gmra.mxu0 %v545
        %v661 = vpop.f32.mrf.mxu0
        %v662 = vadd.f32 0.0, %v661
        %v663 = vpop.f32.mrf.mxu0
        %664 = vdwg.mxu0
        %v666 = vsel %vm422, %v291, 0
        %v669 = vsel %vm422, %v325, 0
        %v672 = vsel %vm422, %v326, 0
        %v675 = vsel %vm422, %v327, 0
        %v678 = vsel %vm422, %v328, 0
        %v681 = vsel %vm422, %v329, 0
        %v684 = vsel %vm422, %v330, 0
        %v687 = vsel %vm422, %v331, 0
        %v690 = vsel %vm422, %v332, 0
        %v693 = vsel %vm422, %v333, 0
        %v696 = vsel %vm422, %v334, 0
        %v699 = vsel %vm422, %v335, 0
        %v702 = vsel %vm422, %v336, 0
        %v705 = vsel %vm422, %v337, 0
        %v708 = vsel %vm422, %v338, 0
        %v711 = vsel %vm422, %v339, 0
        %v714 = vsel %vm422, %v340, 0
        %716 = vmatprep.subr.mxu0 0.0
        %717 = vmatpush1.xpose.msra.mxu0 %v714
        %718 = vmatprep.subr.mxu0 0.0
        %719 = vmatpush1.xpose.msra.mxu0 %v711
        %720 = vmatprep.subr.mxu0 0.0
        %721 = vmatpush1.xpose.msra.mxu0 %v708
        %722 = vmatprep.subr.mxu0 0.0
        %723 = vmatpush1.xpose.msra.mxu0 %v705
        %724 = vmatprep.subr.mxu0 0.0
        %725 = vmatpush1.xpose.msra.mxu0 %v702
        %726 = vmatprep.subr.mxu0 0.0
        %727 = vmatpush1.xpose.msra.mxu0 %v699
        %728 = vmatprep.subr.mxu0 0.0
        %729 = vmatpush1.xpose.msra.mxu0 %v696
        %730 = vmatprep.subr.mxu0 0.0
        %731 = vmatpush1.xpose.msra.mxu0 %v693
        %732 = vmatprep.subr.mxu0 0.0
        %733 = vmatpush1.xpose.msra.mxu0 %v690
        %734 = vmatprep.subr.mxu0 0.0
        %735 = vmatpush1.xpose.msra.mxu0 %v687
        %736 = vmatprep.subr.mxu0 0.0
        %737 = vmatpush1.xpose.msra.mxu0 %v684
        %738 = vmatprep.subr.mxu0 0.0
        %739 = vmatpush1.xpose.msra.mxu0 %v681
        %740 = vmatprep.subr.mxu0 0.0
        %741 = vmatpush1.xpose.msra.mxu0 %v678
        %742 = vmatprep.subr.mxu0 0.0
        %743 = vmatpush1.xpose.msra.mxu0 %v675
        %744 = vmatprep.subr.mxu0 0.0
        %745 = vmatpush1.xpose.msra.mxu0 %v672
        %746 = vmatprep.subr.mxu0 0.0
        %747 = vmatpush1.xpose.msra.mxu0 %v669
        %748 = vmatprep.subr.mxu0 0.0
        %749 = vmatpush2.xpose.msra.mxu0 0.0
        %750 = vmatprep.subr.mxu0 0.0
        %751 = vmatpush2.xpose.msra.mxu0 0.0
        %752 = vmatprep.subr.mxu0 0.0
        %753 = vmatpush2.xpose.msra.mxu0 0.0
        %754 = vmatprep.subr.mxu0 0.0
        %755 = vmatpush2.xpose.msra.mxu0 0.0
        %756 = vmatprep.subr.mxu0 0.0
        %757 = vmatpush2.xpose.msra.mxu0 0.0
        %758 = vmatprep.subr.mxu0 0.0
        %759 = vmatpush2.xpose.msra.mxu0 0.0
        %760 = vmatprep.subr.mxu0 0.0
        %761 = vmatpush2.xpose.msra.mxu0 0.0
        %762 = vmatprep.subr.mxu0 0.0
        %763 = vmatpush2.xpose.msra.mxu0 0.0
        %764 = vmatprep.subr.mxu0 0.0
        %765 = vmatpush2.xpose.msra.mxu0 0.0
        %766 = vmatprep.subr.mxu0 0.0
        %767 = vmatpush2.xpose.msra.mxu0 0.0
        %768 = vmatprep.subr.mxu0 0.0
        %769 = vmatpush2.xpose.msra.mxu0 0.0
        %770 = vmatprep.subr.mxu0 0.0
        %771 = vmatpush2.xpose.msra.mxu0 0.0
        %772 = vmatprep.subr.mxu0 0.0
        %773 = vmatpush2.xpose.msra.mxu0 0.0
        %774 = vmatprep.subr.mxu0 0.0
        %775 = vmatpush2.xpose.msra.mxu0 0.0
        %776 = vmatprep.subr.mxu0 0.0
        %777 = vmatpush2.xpose.msra.mxu0 0.0
        %778 = vmatprep.subr.mxu0 0.0
        %779 = vmatpush2.xpose.msra.mxu0 0.0
        %780 = vmatprep.mubr.f32.mxu0 0.0
        %781 = vmatmul.mubr.f32.gmra.mxu0 %v666
        %v782 = vpop.f32.mrf.mxu0
        %v783 = vadd.f32 0.0, %v782
        %v784 = vpop.f32.mrf.mxu0
        %785 = vdwg.mxu0
        %v787 = vsel %vm422, %v292, 0
        %v790 = vsel %vm422, %v341, 0
        %v793 = vsel %vm422, %v342, 0
        %v796 = vsel %vm422, %v343, 0
        %v799 = vsel %vm422, %v344, 0
        %v802 = vsel %vm422, %v345, 0
        %v805 = vsel %vm422, %v346, 0
        %v808 = vsel %vm422, %v347, 0
        %v811 = vsel %vm422, %v348, 0
        %v814 = vsel %vm422, %v349, 0
        %v817 = vsel %vm422, %v350, 0
        %v820 = vsel %vm422, %v351, 0
        %v823 = vsel %vm422, %v352, 0
        %v826 = vsel %vm422, %v353, 0
        %v829 = vsel %vm422, %v354, 0
        %v832 = vsel %vm422, %v355, 0
        %v835 = vsel %vm422, %v356, 0
        %837 = vmatprep.subr.mxu0 0.0
        %838 = vmatpush1.xpose.msra.mxu0 %v835
        %839 = vmatprep.subr.mxu0 0.0
        %840 = vmatpush1.xpose.msra.mxu0 %v832
        %841 = vmatprep.subr.mxu0 0.0
        %842 = vmatpush1.xpose.msra.mxu0 %v829
        %843 = vmatprep.subr.mxu0 0.0
        %844 = vmatpush1.xpose.msra.mxu0 %v826
        %845 = vmatprep.subr.mxu0 0.0
        %846 = vmatpush1.xpose.msra.mxu0 %v823
        %847 = vmatprep.subr.mxu0 0.0
        %848 = vmatpush1.xpose.msra.mxu0 %v820
        %849 = vmatprep.subr.mxu0 0.0
        %850 = vmatpush1.xpose.msra.mxu0 %v817
        %851 = vmatprep.subr.mxu0 0.0
        %852 = vmatpush1.xpose.msra.mxu0 %v814
        %853 = vmatprep.subr.mxu0 0.0
        %854 = vmatpush1.xpose.msra.mxu0 %v811
        %855 = vmatprep.subr.mxu0 0.0
        %856 = vmatpush1.xpose.msra.mxu0 %v808
        %857 = vmatprep.subr.mxu0 0.0
        %858 = vmatpush1.xpose.msra.mxu0 %v805
        %859 = vmatprep.subr.mxu0 0.0
        %860 = vmatpush1.xpose.msra.mxu0 %v802
        %861 = vmatprep.subr.mxu0 0.0
        %862 = vmatpush1.xpose.msra.mxu0 %v799
        %863 = vmatprep.subr.mxu0 0.0
        %864 = vmatpush1.xpose.msra.mxu0 %v796
        %865 = vmatprep.subr.mxu0 0.0
        %866 = vmatpush1.xpose.msra.mxu0 %v793
        %867 = vmatprep.subr.mxu0 0.0
        %868 = vmatpush1.xpose.msra.mxu0 %v790
        %869 = vmatprep.subr.mxu0 0.0
        %870 = vmatpush2.xpose.msra.mxu0 0.0
        %871 = vmatprep.subr.mxu0 0.0
        %872 = vmatpush2.xpose.msra.mxu0 0.0
        %873 = vmatprep.subr.mxu0 0.0
        %874 = vmatpush2.xpose.msra.mxu0 0.0
        %875 = vmatprep.subr.mxu0 0.0
        %876 = vmatpush2.xpose.msra.mxu0 0.0
        %877 = vmatprep.subr.mxu0 0.0
        %878 = vmatpush2.xpose.msra.mxu0 0.0
        %879 = vmatprep.subr.mxu0 0.0
        %880 = vmatpush2.xpose.msra.mxu0 0.0
        %881 = vmatprep.subr.mxu0 0.0
        %882 = vmatpush2.xpose.msra.mxu0 0.0
        %883 = vmatprep.subr.mxu0 0.0
        %884 = vmatpush2.xpose.msra.mxu0 0.0
        %885 = vmatprep.subr.mxu0 0.0
        %886 = vmatpush2.xpose.msra.mxu0 0.0
        %887 = vmatprep.subr.mxu0 0.0
        %888 = vmatpush2.xpose.msra.mxu0 0.0
        %889 = vmatprep.subr.mxu0 0.0
        %890 = vmatpush2.xpose.msra.mxu0 0.0
        %891 = vmatprep.subr.mxu0 0.0
        %892 = vmatpush2.xpose.msra.mxu0 0.0
        %893 = vmatprep.subr.mxu0 0.0
        %894 = vmatpush2.xpose.msra.mxu0 0.0
        %895 = vmatprep.subr.mxu0 0.0
        %896 = vmatpush2.xpose.msra.mxu0 0.0
        %897 = vmatprep.subr.mxu0 0.0
        %898 = vmatpush2.xpose.msra.mxu0 0.0
        %899 = vmatprep.subr.mxu0 0.0
        %900 = vmatpush2.xpose.msra.mxu0 0.0
        %901 = vmatprep.mubr.f32.mxu0 0.0
        %902 = vmatmul.mubr.f32.gmra.mxu0 %v787
        %v903 = vpop.f32.mrf.mxu0
        %v904 = vadd.f32 0.0, %v903
        %v905 = vpop.f32.mrf.mxu0
        %906 = vdwg.mxu0
        %v907 = vmul.f32 %v541, 0.35355338
        %v908 = vmul.f32 %v662, 0.35355338
        %v909 = vmul.f32 %v783, 0.35355338
        %v910 = vmul.f32 %v904, 0.35355338
        %v912 = vlaneseq
        %v913 = vshrl.u32 %v912, 7
        %v914 = vsub.s32 0, %v913
        %v915 = vrot.slane %v421, %v914
        %v917 = vadd.f32 %v907, %v915
        %v918 = vadd.f32 %v908, %v915
        %v919 = vadd.f32 %v909, %v915
        %v920 = vadd.f32 %v910, %v915
        %921 = vmax.xlane.f32.xlu0 %v917
        %v922 = vpop.xlane.xlu0 %921
        %923 = vmax.xlane.f32.xlu0 %v918
        %v924 = vpop.xlane.xlu0 %923
        %925 = vmax.xlane.f32.xlu0 %v919
        %v926 = vpop.xlane.xlu0 %925
        %927 = vmax.xlane.f32.xlu0 %v920
        %v928 = vpop.xlane.xlu0 %927
        %v929 = vsub.f32 %v917, %v922
        %v930 = vsub.f32 %v918, %v924
        %v931 = vsub.f32 %v919, %v926
        %v932 = vsub.f32 %v920, %v928
        %v933 = vmul.f32 %v929, 1.442695
        %v934 = vpow.pop %v933
        %v935 = vmul.f32 %v930, 1.442695
        %v936 = vpow.pop %v935
        %v937 = vmul.f32 %v931, 1.442695
        %v938 = vpow.pop %v937
        %v939 = vmul.f32 %v932, 1.442695
        %v940 = vpow.pop %v939
        %941 = vadd.xlane.f32.xlu0 %v934
        %v942 = vpop.xlane.xlu0 %941
        %943 = vadd.xlane.f32.xlu0 %v936
        %v944 = vpop.xlane.xlu0 %943
        %945 = vadd.xlane.f32.xlu0 %v938
        %v946 = vpop.xlane.xlu0 %945
        %947 = vadd.xlane.f32.xlu0 %v940
        %v948 = vpop.xlane.xlu0 %947
        %v949 = vrcp.pop %v942
        %v950 = vrcp.pop %v944
        %v951 = vrcp.pop %v946
        %v952 = vrcp.pop %v948
        %v953 = vmul.f32 %v934, %v949
        %v954 = vmul.f32 %v936, %v950
        %v955 = vmul.f32 %v938, %v951
        %v956 = vmul.f32 %v940, %v952
        %957 = vmatprep.subr.mxu0 0.0
        %958 = vmatpush1.msra.mxu0 %v372
        %959 = vmatprep.subr.mxu0 0.0
        %960 = vmatpush1.msra.mxu0 %v371
        %961 = vmatprep.subr.mxu0 0.0
        %962 = vmatpush1.msra.mxu0 %v370
        %963 = vmatprep.subr.mxu0 0.0
        %964 = vmatpush1.msra.mxu0 %v369
        %965 = vmatprep.subr.mxu0 0.0
        %966 = vmatpush1.msra.mxu0 %v368
        %967 = vmatprep.subr.mxu0 0.0
        %968 = vmatpush1.msra.mxu0 %v367
        %969 = vmatprep.subr.mxu0 0.0
        %970 = vmatpush1.msra.mxu0 %v366
        %971 = vmatprep.subr.mxu0 0.0
        %972 = vmatpush1.msra.mxu0 %v365
        %973 = vmatprep.subr.mxu0 0.0
        %974 = vmatpush1.msra.mxu0 %v364
        %975 = vmatprep.subr.mxu0 0.0
        %976 = vmatpush1.msra.mxu0 %v363
        %977 = vmatprep.subr.mxu0 0.0
        %978 = vmatpush1.msra.mxu0 %v362
        %979 = vmatprep.subr.mxu0 0.0
        %980 = vmatpush1.msra.mxu0 %v361
        %981 = vmatprep.subr.mxu0 0.0
        %982 = vmatpush1.msra.mxu0 %v360
        %983 = vmatprep.subr.mxu0 0.0
        %984 = vmatpush1.msra.mxu0 %v359
        %985 = vmatprep.subr.mxu0 0.0
        %986 = vmatpush1.msra.mxu0 %v358
        %987 = vmatprep.subr.mxu0 0.0
        %988 = vmatpush1.msra.mxu0 %v357
        %989 = vmatprep.subr.mxu0 0.0
        %990 = vmatpush2.msra.mxu0 0.0
        %991 = vmatprep.subr.mxu0 0.0
        %992 = vmatpush2.msra.mxu0 0.0
        %993 = vmatprep.subr.mxu0 0.0
        %994 = vmatpush2.msra.mxu0 0.0
        %995 = vmatprep.subr.mxu0 0.0
        %996 = vmatpush2.msra.mxu0 0.0
        %997 = vmatprep.subr.mxu0 0.0
        %998 = vmatpush2.msra.mxu0 0.0
        %999 = vmatprep.subr.mxu0 0.0
        %1000 = vmatpush2.msra.mxu0 0.0
        %1001 = vmatprep.subr.mxu0 0.0
        %1002 = vmatpush2.msra.mxu0 0.0
        %1003 = vmatprep.subr.mxu0 0.0
        %1004 = vmatpush2.msra.mxu0 0.0
        %1005 = vmatprep.subr.mxu0 0.0
        %1006 = vmatpush2.msra.mxu0 0.0
        %1007 = vmatprep.subr.mxu0 0.0
        %1008 = vmatpush2.msra.mxu0 0.0
        %1009 = vmatprep.subr.mxu0 0.0
        %1010 = vmatpush2.msra.mxu0 0.0
        %1011 = vmatprep.subr.mxu0 0.0
        %1012 = vmatpush2.msra.mxu0 0.0
        %1013 = vmatprep.subr.mxu0 0.0
        %1014 = vmatpush2.msra.mxu0 0.0
        %1015 = vmatprep.subr.mxu0 0.0
        %1016 = vmatpush2.msra.mxu0 0.0
        %1017 = vmatprep.subr.mxu0 0.0
        %1018 = vmatpush2.msra.mxu0 0.0
        %1019 = vmatprep.subr.mxu0 0.0
        %1020 = vmatpush2.msra.mxu0 0.0
        %1021 = vmatprep.mubr.f32.mxu0 0.0
        %1022 = vmatmul.mubr.f32.gmra.mxu0 %v953
        %v1023 = vpop.f32.mrf.mxu0
        %v1024 = vadd.f32 0.0, %v1023
        %v1025 = vpop.f32.mrf.mxu0
        %1026 = vdwg.mxu0
        %1027 = vmatprep.subr.mxu0 0.0
        %1028 = vmatpush1.msra.mxu0 %v388
        %1029 = vmatprep.subr.mxu0 0.0
        %1030 = vmatpush1.msra.mxu0 %v387
        %1031 = vmatprep.subr.mxu0 0.0
        %1032 = vmatpush1.msra.mxu0 %v386
        %1033 = vmatprep.subr.mxu0 0.0
        %1034 = vmatpush1.msra.mxu0 %v385
        %1035 = vmatprep.subr.mxu0 0.0
        %1036 = vmatpush1.msra.mxu0 %v384
        %1037 = vmatprep.subr.mxu0 0.0
        %1038 = vmatpush1.msra.mxu0 %v383
        %1039 = vmatprep.subr.mxu0 0.0
        %1040 = vmatpush1.msra.mxu0 %v382
        %1041 = vmatprep.subr.mxu0 0.0
        %1042 = vmatpush1.msra.mxu0 %v381
        %1043 = vmatprep.subr.mxu0 0.0
        %1044 = vmatpush1.msra.mxu0 %v380
        %1045 = vmatprep.subr.mxu0 0.0
        %1046 = vmatpush1.msra.mxu0 %v379
        %1047 = vmatprep.subr.mxu0 0.0
        %1048 = vmatpush1.msra.mxu0 %v378
        %1049 = vmatprep.subr.mxu0 0.0
        %1050 = vmatpush1.msra.mxu0 %v377
        %1051 = vmatprep.subr.mxu0 0.0
        %1052 = vmatpush1.msra.mxu0 %v376
        %1053 = vmatprep.subr.mxu0 0.0
        %1054 = vmatpush1.msra.mxu0 %v375
        %1055 = vmatprep.subr.mxu0 0.0
        %1056 = vmatpush1.msra.mxu0 %v374
        %1057 = vmatprep.subr.mxu0 0.0
        %1058 = vmatpush1.msra.mxu0 %v373
        %1059 = vmatprep.subr.mxu0 0.0
        %1060 = vmatpush2.msra.mxu0 0.0
        %1061 = vmatprep.subr.mxu0 0.0
        %1062 = vmatpush2.msra.mxu0 0.0
        %1063 = vmatprep.subr.mxu0 0.0
        %1064 = vmatpush2.msra.mxu0 0.0
        %1065 = vmatprep.subr.mxu0 0.0
        %1066 = vmatpush2.msra.mxu0 0.0
        %1067 = vmatprep.subr.mxu0 0.0
        %1068 = vmatpush2.msra.mxu0 0.0
        %1069 = vmatprep.subr.mxu0 0.0
        %1070 = vmatpush2.msra.mxu0 0.0
        %1071 = vmatprep.subr.mxu0 0.0
        %1072 = vmatpush2.msra.mxu0 0.0
        %1073 = vmatprep.subr.mxu0 0.0
        %1074 = vmatpush2.msra.mxu0 0.0
        %1075 = vmatprep.subr.mxu0 0.0
        %1076 = vmatpush2.msra.mxu0 0.0
        %1077 = vmatprep.subr.mxu0 0.0
        %1078 = vmatpush2.msra.mxu0 0.0
        %1079 = vmatprep.subr.mxu0 0.0
        %1080 = vmatpush2.msra.mxu0 0.0
        %1081 = vmatprep.subr.mxu0 0.0
        %1082 = vmatpush2.msra.mxu0 0.0
        %1083 = vmatprep.subr.mxu0 0.0
        %1084 = vmatpush2.msra.mxu0 0.0
        %1085 = vmatprep.subr.mxu0 0.0
        %1086 = vmatpush2.msra.mxu0 0.0
        %1087 = vmatprep.subr.mxu0 0.0
        %1088 = vmatpush2.msra.mxu0 0.0
        %1089 = vmatprep.subr.mxu0 0.0
        %1090 = vmatpush2.msra.mxu0 0.0
        %1091 = vmatprep.mubr.f32.mxu0 0.0
        %1092 = vmatmul.mubr.f32.gmra.mxu0 %v954
        %v1093 = vpop.f32.mrf.mxu0
        %v1094 = vadd.f32 0.0, %v1093
        %v1095 = vpop.f32.mrf.mxu0
        %1096 = vdwg.mxu0
        %1097 = vmatprep.subr.mxu0 0.0
        %1098 = vmatpush1.msra.mxu0 %v404
        %1099 = vmatprep.subr.mxu0 0.0
        %1100 = vmatpush1.msra.mxu0 %v403
        %1101 = vmatprep.subr.mxu0 0.0
        %1102 = vmatpush1.msra.mxu0 %v402
        %1103 = vmatprep.subr.mxu0 0.0
        %1104 = vmatpush1.msra.mxu0 %v401
        %1105 = vmatprep.subr.mxu0 0.0
        %1106 = vmatpush1.msra.mxu0 %v400
        %1107 = vmatprep.subr.mxu0 0.0
        %1108 = vmatpush1.msra.mxu0 %v399
        %1109 = vmatprep.subr.mxu0 0.0
        %1110 = vmatpush1.msra.mxu0 %v398
        %1111 = vmatprep.subr.mxu0 0.0
        %1112 = vmatpush1.msra.mxu0 %v397
        %1113 = vmatprep.subr.mxu0 0.0
        %1114 = vmatpush1.msra.mxu0 %v396
        %1115 = vmatprep.subr.mxu0 0.0
        %1116 = vmatpush1.msra.mxu0 %v395
        %1117 = vmatprep.subr.mxu0 0.0
        %1118 = vmatpush1.msra.mxu0 %v394
        %1119 = vmatprep.subr.mxu0 0.0
        %1120 = vmatpush1.msra.mxu0 %v393
        %1121 = vmatprep.subr.mxu0 0.0
        %1122 = vmatpush1.msra.mxu0 %v392
        %1123 = vmatprep.subr.mxu0 0.0
        %1124 = vmatpush1.msra.mxu0 %v391
        %1125 = vmatprep.subr.mxu0 0.0
        %1126 = vmatpush1.msra.mxu0 %v390
        %1127 = vmatprep.subr.mxu0 0.0
        %1128 = vmatpush1.msra.mxu0 %v389
        %1129 = vmatprep.subr.mxu0 0.0
        %1130 = vmatpush2.msra.mxu0 0.0
        %1131 = vmatprep.subr.mxu0 0.0
        %1132 = vmatpush2.msra.mxu0 0.0
        %1133 = vmatprep.subr.mxu0 0.0
        %1134 = vmatpush2.msra.mxu0 0.0
        %1135 = vmatprep.subr.mxu0 0.0
        %1136 = vmatpush2.msra.mxu0 0.0
        %1137 = vmatprep.subr.mxu0 0.0
        %1138 = vmatpush2.msra.mxu0 0.0
        %1139 = vmatprep.subr.mxu0 0.0
        %1140 = vmatpush2.msra.mxu0 0.0
        %1141 = vmatprep.subr.mxu0 0.0
        %1142 = vmatpush2.msra.mxu0 0.0
        %1143 = vmatprep.subr.mxu0 0.0
        %1144 = vmatpush2.msra.mxu0 0.0
        %1145 = vmatprep.subr.mxu0 0.0
        %1146 = vmatpush2.msra.mxu0 0.0
        %1147 = vmatprep.subr.mxu0 0.0
        %1148 = vmatpush2.msra.mxu0 0.0
        %1149 = vmatprep.subr.mxu0 0.0
        %1150 = vmatpush2.msra.mxu0 0.0
        %1151 = vmatprep.subr.mxu0 0.0
        %1152 = vmatpush2.msra.mxu0 0.0
        %1153 = vmatprep.subr.mxu0 0.0
        %1154 = vmatpush2.msra.mxu0 0.0
        %1155 = vmatprep.subr.mxu0 0.0
        %1156 = vmatpush2.msra.mxu0 0.0
        %1157 = vmatprep.subr.mxu0 0.0
        %1158 = vmatpush2.msra.mxu0 0.0
        %1159 = vmatprep.subr.mxu0 0.0
        %1160 = vmatpush2.msra.mxu0 0.0
        %1161 = vmatprep.mubr.f32.mxu0 0.0
        %1162 = vmatmul.mubr.f32.gmra.mxu0 %v955
        %v1163 = vpop.f32.mrf.mxu0
        %v1164 = vadd.f32 0.0, %v1163
        %v1165 = vpop.f32.mrf.mxu0
        %1166 = vdwg.mxu0
        %1167 = vmatprep.subr.mxu0 0.0
        %1168 = vmatpush1.msra.mxu0 %v420
        %1169 = vmatprep.subr.mxu0 0.0
        %1170 = vmatpush1.msra.mxu0 %v419
        %1171 = vmatprep.subr.mxu0 0.0
        %1172 = vmatpush1.msra.mxu0 %v418
        %1173 = vmatprep.subr.mxu0 0.0
        %1174 = vmatpush1.msra.mxu0 %v417
        %1175 = vmatprep.subr.mxu0 0.0
        %1176 = vmatpush1.msra.mxu0 %v416
        %1177 = vmatprep.subr.mxu0 0.0
        %1178 = vmatpush1.msra.mxu0 %v415
        %1179 = vmatprep.subr.mxu0 0.0
        %1180 = vmatpush1.msra.mxu0 %v414
        %1181 = vmatprep.subr.mxu0 0.0
        %1182 = vmatpush1.msra.mxu0 %v413
        %1183 = vmatprep.subr.mxu0 0.0
        %1184 = vmatpush1.msra.mxu0 %v412
        %1185 = vmatprep.subr.mxu0 0.0
        %1186 = vmatpush1.msra.mxu0 %v411
        %1187 = vmatprep.subr.mxu0 0.0
        %1188 = vmatpush1.msra.mxu0 %v410
        %1189 = vmatprep.subr.mxu0 0.0
        %1190 = vmatpush1.msra.mxu0 %v409
        %1191 = vmatprep.subr.mxu0 0.0
        %1192 = vmatpush1.msra.mxu0 %v408
        %1193 = vmatprep.subr.mxu0 0.0
        %1194 = vmatpush1.msra.mxu0 %v407
        %1195 = vmatprep.subr.mxu0 0.0
        %1196 = vmatpush1.msra.mxu0 %v406
        %1197 = vmatprep.subr.mxu0 0.0
        %1198 = vmatpush1.msra.mxu0 %v405
        %1199 = vmatprep.subr.mxu0 0.0
        %1200 = vmatpush2.msra.mxu0 0.0
        %1201 = vmatprep.subr.mxu0 0.0
        %1202 = vmatpush2.msra.mxu0 0.0
        %1203 = vmatprep.subr.mxu0 0.0
        %1204 = vmatpush2.msra.mxu0 0.0
        %1205 = vmatprep.subr.mxu0 0.0
        %1206 = vmatpush2.msra.mxu0 0.0
        %1207 = vmatprep.subr.mxu0 0.0
        %1208 = vmatpush2.msra.mxu0 0.0
        %1209 = vmatprep.subr.mxu0 0.0
        %1210 = vmatpush2.msra.mxu0 0.0
        %1211 = vmatprep.subr.mxu0 0.0
        %1212 = vmatpush2.msra.mxu0 0.0
        %1213 = vmatprep.subr.mxu0 0.0
        %1214 = vmatpush2.msra.mxu0 0.0
        %1215 = vmatprep.subr.mxu0 0.0
        %1216 = vmatpush2.msra.mxu0 0.0
        %1217 = vmatprep.subr.mxu0 0.0
        %1218 = vmatpush2.msra.mxu0 0.0
        %1219 = vmatprep.subr.mxu0 0.0
        %1220 = vmatpush2.msra.mxu0 0.0
        %1221 = vmatprep.subr.mxu0 0.0
        %1222 = vmatpush2.msra.mxu0 0.0
        %1223 = vmatprep.subr.mxu0 0.0
        %1224 = vmatpush2.msra.mxu0 0.0
        %1225 = vmatprep.subr.mxu0 0.0
        %1226 = vmatpush2.msra.mxu0 0.0
        %1227 = vmatprep.subr.mxu0 0.0
        %1228 = vmatpush2.msra.mxu0 0.0
        %1229 = vmatprep.subr.mxu0 0.0
        %1230 = vmatpush2.msra.mxu0 0.0
        %1231 = vmatprep.mubr.f32.mxu0 0.0
        %1232 = vmatmul.mubr.f32.gmra.mxu0 %v956
        %v1233 = vpop.f32.mrf.mxu0
        %v1234 = vadd.f32 0.0, %v1233
        %v1235 = vpop.f32.mrf.mxu0
        %1236 = vdwg.mxu0
        %v1237 = vld [vmem:[%s4] sm:$0xff]
        %s1238 = scalar_lea.vmem %s4, 8
        %v1239 = vld [vmem:[%s1238] sm:$0xff]
        %v1241 = vsel %vm422, %v1094, 0
        %1243 = vmatprep.subr.mxu0 0.0
        %1244 = vmatpush1.msra.mxu0 0.0
        %1245 = vmatprep.subr.mxu0 0.0
        %1246 = vmatpush1.msra.mxu0 0.0
        %1247 = vmatprep.subr.mxu0 0.0
        %1248 = vmatpush1.msra.mxu0 0.0
        %1249 = vmatprep.subr.mxu0 0.0
        %1250 = vmatpush1.msra.mxu0 0.0
        %1251 = vmatprep.subr.mxu0 0.0
        %1252 = vmatpush1.msra.mxu0 0.0
        %1253 = vmatprep.subr.mxu0 0.0
        %1254 = vmatpush1.msra.mxu0 0.0
        %1255 = vmatprep.subr.mxu0 0.0
        %1256 = vmatpush1.msra.mxu0 0.0
        %1257 = vmatprep.subr.mxu0 0.0
        %1258 = vmatpush1.msra.mxu0 0.0
        %1259 = vmatprep.subr.mxu0 0.0
        %1260 = vmatpush1.msra.mxu0 0.0
        %1261 = vmatprep.subr.mxu0 0.0
        %1262 = vmatpush1.msra.mxu0 0.0
        %1263 = vmatprep.subr.mxu0 0.0
        %1264 = vmatpush1.msra.mxu0 0.0
        %1265 = vmatprep.subr.mxu0 0.0
        %1266 = vmatpush1.msra.mxu0 0.0
        %1267 = vmatprep.subr.mxu0 0.0
        %1268 = vmatpush1.msra.mxu0 0.0
        %1269 = vmatprep.subr.mxu0 0.0
        %1270 = vmatpush1.msra.mxu0 0.0
        %1271 = vmatprep.subr.mxu0 0.0
        %1272 = vmatpush1.msra.mxu0 0.0
        %1273 = vmatprep.subr.mxu0 0.0
        %1274 = vmatpush1.msra.mxu0 %v1239
        %1275 = vmatprep.subr.mxu0 0.0
        %1276 = vmatpush2.msra.mxu0 0.0
        %1277 = vmatprep.subr.mxu0 0.0
        %1278 = vmatpush2.msra.mxu0 0.0
        %1279 = vmatprep.subr.mxu0 0.0
        %1280 = vmatpush2.msra.mxu0 0.0
        %1281 = vmatprep.subr.mxu0 0.0
        %1282 = vmatpush2.msra.mxu0 0.0
        %1283 = vmatprep.subr.mxu0 0.0
        %1284 = vmatpush2.msra.mxu0 0.0
        %1285 = vmatprep.subr.mxu0 0.0
        %1286 = vmatpush2.msra.mxu0 0.0
        %1287 = vmatprep.subr.mxu0 0.0
        %1288 = vmatpush2.msra.mxu0 0.0
        %1289 = vmatprep.subr.mxu0 0.0
        %1290 = vmatpush2.msra.mxu0 0.0
        %1291 = vmatprep.subr.mxu0 0.0
        %1292 = vmatpush2.msra.mxu0 0.0
        %1293 = vmatprep.subr.mxu0 0.0
        %1294 = vmatpush2.msra.mxu0 0.0
        %1295 = vmatprep.subr.mxu0 0.0
        %1296 = vmatpush2.msra.mxu0 0.0
        %1297 = vmatprep.subr.mxu0 0.0
        %1298 = vmatpush2.msra.mxu0 0.0
        %1299 = vmatprep.subr.mxu0 0.0
        %1300 = vmatpush2.msra.mxu0 0.0
        %1301 = vmatprep.subr.mxu0 0.0
        %1302 = vmatpush2.msra.mxu0 0.0
        %1303 = vmatprep.subr.mxu0 0.0
        %1304 = vmatpush2.msra.mxu0 0.0
        %1305 = vmatprep.subr.mxu0 0.0
        %1306 = vmatpush2.msra.mxu0 0.0
        %1307 = vmatprep.mubr.f32.mxu0 0.0
        %1308 = vmatmul.mubr.f32.gmra.mxu0 %v1241
        %v1309 = vpop.f32.mrf.mxu0
        %v1310 = vadd.f32 0.0, %v1309
        %v1311 = vpop.f32.mrf.mxu0
        %1312 = vdwg.mxu0
        %v1314 = vsel %vm422, %v1024, 0
        %1316 = vmatprep.subr.mxu0 0.0
        %1317 = vmatpush1.msra.mxu0 0.0
        %1318 = vmatprep.subr.mxu0 0.0
        %1319 = vmatpush1.msra.mxu0 0.0
        %1320 = vmatprep.subr.mxu0 0.0
        %1321 = vmatpush1.msra.mxu0 0.0
        %1322 = vmatprep.subr.mxu0 0.0
        %1323 = vmatpush1.msra.mxu0 0.0
        %1324 = vmatprep.subr.mxu0 0.0
        %1325 = vmatpush1.msra.mxu0 0.0
        %1326 = vmatprep.subr.mxu0 0.0
        %1327 = vmatpush1.msra.mxu0 0.0
        %1328 = vmatprep.subr.mxu0 0.0
        %1329 = vmatpush1.msra.mxu0 0.0
        %1330 = vmatprep.subr.mxu0 0.0
        %1331 = vmatpush1.msra.mxu0 0.0
        %1332 = vmatprep.subr.mxu0 0.0
        %1333 = vmatpush1.msra.mxu0 0.0
        %1334 = vmatprep.subr.mxu0 0.0
        %1335 = vmatpush1.msra.mxu0 0.0
        %1336 = vmatprep.subr.mxu0 0.0
        %1337 = vmatpush1.msra.mxu0 0.0
        %1338 = vmatprep.subr.mxu0 0.0
        %1339 = vmatpush1.msra.mxu0 0.0
        %1340 = vmatprep.subr.mxu0 0.0
        %1341 = vmatpush1.msra.mxu0 0.0
        %1342 = vmatprep.subr.mxu0 0.0
        %1343 = vmatpush1.msra.mxu0 0.0
        %1344 = vmatprep.subr.mxu0 0.0
        %1345 = vmatpush1.msra.mxu0 0.0
        %1346 = vmatprep.subr.mxu0 0.0
        %1347 = vmatpush1.msra.mxu0 %v1237
        %1348 = vmatprep.subr.mxu0 0.0
        %1349 = vmatpush2.msra.mxu0 0.0
        %1350 = vmatprep.subr.mxu0 0.0
        %1351 = vmatpush2.msra.mxu0 0.0
        %1352 = vmatprep.subr.mxu0 0.0
        %1353 = vmatpush2.msra.mxu0 0.0
        %1354 = vmatprep.subr.mxu0 0.0
        %1355 = vmatpush2.msra.mxu0 0.0
        %1356 = vmatprep.subr.mxu0 0.0
        %1357 = vmatpush2.msra.mxu0 0.0
        %1358 = vmatprep.subr.mxu0 0.0
        %1359 = vmatpush2.msra.mxu0 0.0
        %1360 = vmatprep.subr.mxu0 0.0
        %1361 = vmatpush2.msra.mxu0 0.0
        %1362 = vmatprep.subr.mxu0 0.0
        %1363 = vmatpush2.msra.mxu0 0.0
        %1364 = vmatprep.subr.mxu0 0.0
        %1365 = vmatpush2.msra.mxu0 0.0
        %1366 = vmatprep.subr.mxu0 0.0
        %1367 = vmatpush2.msra.mxu0 0.0
        %1368 = vmatprep.subr.mxu0 0.0
        %1369 = vmatpush2.msra.mxu0 0.0
        %1370 = vmatprep.subr.mxu0 0.0
        %1371 = vmatpush2.msra.mxu0 0.0
        %1372 = vmatprep.subr.mxu0 0.0
        %1373 = vmatpush2.msra.mxu0 0.0
        %1374 = vmatprep.subr.mxu0 0.0
        %1375 = vmatpush2.msra.mxu0 0.0
        %1376 = vmatprep.subr.mxu0 0.0
        %1377 = vmatpush2.msra.mxu0 0.0
        %1378 = vmatprep.subr.mxu0 0.0
        %1379 = vmatpush2.msra.mxu0 0.0
        %1380 = vmatprep.mubr.f32.mxu0 0.0
        %1381 = vmatmul.mubr.f32.gmra.mxu0 %v1314
        %v1382 = vpop.f32.mrf.mxu0
        %v1383 = vadd.f32 %v1310, %v1382
        %v1384 = vpop.f32.mrf.mxu0
        %1385 = vdwg.mxu0
        %s1386 = scalar_lea.vmem %s4, 16
        %v1387 = vld [vmem:[%s1386] sm:$0xff]
        %v1389 = vsel %vm422, %v1164, 0
        %1391 = vmatprep.subr.mxu0 0.0
        %1392 = vmatpush1.msra.mxu0 0.0
        %1393 = vmatprep.subr.mxu0 0.0
        %1394 = vmatpush1.msra.mxu0 0.0
        %1395 = vmatprep.subr.mxu0 0.0
        %1396 = vmatpush1.msra.mxu0 0.0
        %1397 = vmatprep.subr.mxu0 0.0
        %1398 = vmatpush1.msra.mxu0 0.0
        %1399 = vmatprep.subr.mxu0 0.0
        %1400 = vmatpush1.msra.mxu0 0.0
        %1401 = vmatprep.subr.mxu0 0.0
        %1402 = vmatpush1.msra.mxu0 0.0
        %1403 = vmatprep.subr.mxu0 0.0
        %1404 = vmatpush1.msra.mxu0 0.0
        %1405 = vmatprep.subr.mxu0 0.0
        %1406 = vmatpush1.msra.mxu0 0.0
        %1407 = vmatprep.subr.mxu0 0.0
        %1408 = vmatpush1.msra.mxu0 0.0
        %1409 = vmatprep.subr.mxu0 0.0
        %1410 = vmatpush1.msra.mxu0 0.0
        %1411 = vmatprep.subr.mxu0 0.0
        %1412 = vmatpush1.msra.mxu0 0.0
        %1413 = vmatprep.subr.mxu0 0.0
        %1414 = vmatpush1.msra.mxu0 0.0
        %1415 = vmatprep.subr.mxu0 0.0
        %1416 = vmatpush1.msra.mxu0 0.0
        %1417 = vmatprep.subr.mxu0 0.0
        %1418 = vmatpush1.msra.mxu0 0.0
        %1419 = vmatprep.subr.mxu0 0.0
        %1420 = vmatpush1.msra.mxu0 0.0
        %1421 = vmatprep.subr.mxu0 0.0
        %1422 = vmatpush1.msra.mxu0 %v1387
        %1423 = vmatprep.subr.mxu0 0.0
        %1424 = vmatpush2.msra.mxu0 0.0
        %1425 = vmatprep.subr.mxu0 0.0
        %1426 = vmatpush2.msra.mxu0 0.0
        %1427 = vmatprep.subr.mxu0 0.0
        %1428 = vmatpush2.msra.mxu0 0.0
        %1429 = vmatprep.subr.mxu0 0.0
        %1430 = vmatpush2.msra.mxu0 0.0
        %1431 = vmatprep.subr.mxu0 0.0
        %1432 = vmatpush2.msra.mxu0 0.0
        %1433 = vmatprep.subr.mxu0 0.0
        %1434 = vmatpush2.msra.mxu0 0.0
        %1435 = vmatprep.subr.mxu0 0.0
        %1436 = vmatpush2.msra.mxu0 0.0
        %1437 = vmatprep.subr.mxu0 0.0
        %1438 = vmatpush2.msra.mxu0 0.0
        %1439 = vmatprep.subr.mxu0 0.0
        %1440 = vmatpush2.msra.mxu0 0.0
        %1441 = vmatprep.subr.mxu0 0.0
        %1442 = vmatpush2.msra.mxu0 0.0
        %1443 = vmatprep.subr.mxu0 0.0
        %1444 = vmatpush2.msra.mxu0 0.0
        %1445 = vmatprep.subr.mxu0 0.0
        %1446 = vmatpush2.msra.mxu0 0.0
        %1447 = vmatprep.subr.mxu0 0.0
        %1448 = vmatpush2.msra.mxu0 0.0
        %1449 = vmatprep.subr.mxu0 0.0
        %1450 = vmatpush2.msra.mxu0 0.0
        %1451 = vmatprep.subr.mxu0 0.0
        %1452 = vmatpush2.msra.mxu0 0.0
        %1453 = vmatprep.subr.mxu0 0.0
        %1454 = vmatpush2.msra.mxu0 0.0
        %1455 = vmatprep.mubr.f32.mxu0 0.0
        %1456 = vmatmul.mubr.f32.gmra.mxu0 %v1389
        %v1457 = vpop.f32.mrf.mxu0
        %v1458 = vadd.f32 0.0, %v1457
        %v1459 = vpop.f32.mrf.mxu0
        %1460 = vdwg.mxu0
        %v1461 = vadd.f32 %v1383, %v1458
        %s1462 = scalar_lea.vmem %s4, 24
        %v1463 = vld [vmem:[%s1462] sm:$0xff]
        %v1465 = vsel %vm422, %v1234, 0
        %1467 = vmatprep.subr.mxu0 0.0
        %1468 = vmatpush1.msra.mxu0 0.0
        %1469 = vmatprep.subr.mxu0 0.0
        %1470 = vmatpush1.msra.mxu0 0.0
        %1471 = vmatprep.subr.mxu0 0.0
        %1472 = vmatpush1.msra.mxu0 0.0
        %1473 = vmatprep.subr.mxu0 0.0
        %1474 = vmatpush1.msra.mxu0 0.0
        %1475 = vmatprep.subr.mxu0 0.0
        %1476 = vmatpush1.msra.mxu0 0.0
        %1477 = vmatprep.subr.mxu0 0.0
        %1478 = vmatpush1.msra.mxu0 0.0
        %1479 = vmatprep.subr.mxu0 0.0
        %1480 = vmatpush1.msra.mxu0 0.0
        %1481 = vmatprep.subr.mxu0 0.0
        %1482 = vmatpush1.msra.mxu0 0.0
        %1483 = vmatprep.subr.mxu0 0.0
        %1484 = vmatpush1.msra.mxu0 0.0
        %1485 = vmatprep.subr.mxu0 0.0
        %1486 = vmatpush1.msra.mxu0 0.0
        %1487 = vmatprep.subr.mxu0 0.0
        %1488 = vmatpush1.msra.mxu0 0.0
        %1489 = vmatprep.subr.mxu0 0.0
        %1490 = vmatpush1.msra.mxu0 0.0
        %1491 = vmatprep.subr.mxu0 0.0
        %1492 = vmatpush1.msra.mxu0 0.0
        %1493 = vmatprep.subr.mxu0 0.0
        %1494 = vmatpush1.msra.mxu0 0.0
        %1495 = vmatprep.subr.mxu0 0.0
        %1496 = vmatpush1.msra.mxu0 0.0
        %1497 = vmatprep.subr.mxu0 0.0
        %1498 = vmatpush1.msra.mxu0 %v1463
        %1499 = vmatprep.subr.mxu0 0.0
        %1500 = vmatpush2.msra.mxu0 0.0
        %1501 = vmatprep.subr.mxu0 0.0
        %1502 = vmatpush2.msra.mxu0 0.0
        %1503 = vmatprep.subr.mxu0 0.0
        %1504 = vmatpush2.msra.mxu0 0.0
        %1505 = vmatprep.subr.mxu0 0.0
        %1506 = vmatpush2.msra.mxu0 0.0
        %1507 = vmatprep.subr.mxu0 0.0
        %1508 = vmatpush2.msra.mxu0 0.0
        %1509 = vmatprep.subr.mxu0 0.0
        %1510 = vmatpush2.msra.mxu0 0.0
        %1511 = vmatprep.subr.mxu0 0.0
        %1512 = vmatpush2.msra.mxu0 0.0
        %1513 = vmatprep.subr.mxu0 0.0
        %1514 = vmatpush2.msra.mxu0 0.0
        %1515 = vmatprep.subr.mxu0 0.0
        %1516 = vmatpush2.msra.mxu0 0.0
        %1517 = vmatprep.subr.mxu0 0.0
        %1518 = vmatpush2.msra.mxu0 0.0
        %1519 = vmatprep.subr.mxu0 0.0
        %1520 = vmatpush2.msra.mxu0 0.0
        %1521 = vmatprep.subr.mxu0 0.0
        %1522 = vmatpush2.msra.mxu0 0.0
        %1523 = vmatprep.subr.mxu0 0.0
        %1524 = vmatpush2.msra.mxu0 0.0
        %1525 = vmatprep.subr.mxu0 0.0
        %1526 = vmatpush2.msra.mxu0 0.0
        %1527 = vmatprep.subr.mxu0 0.0
        %1528 = vmatpush2.msra.mxu0 0.0
        %1529 = vmatprep.subr.mxu0 0.0
        %1530 = vmatpush2.msra.mxu0 0.0
        %1531 = vmatprep.mubr.f32.mxu0 0.0
        %1532 = vmatmul.mubr.f32.gmra.mxu0 %v1465
        %v1533 = vpop.f32.mrf.mxu0
        %v1534 = vadd.f32 0.0, %v1533
        %v1535 = vpop.f32.mrf.mxu0
        %1536 = vdwg.mxu0
        %v1537 = vadd.f32 %v1461, %v1534
        %v1538 = vld [vmem:[%s5] sm:$0x1]
        %v1540 = vlaneseq
        %v1541 = vshrl.u32 %v1540, 7
        %v1542 = vsub.s32 0, %v1541
        %v1543 = vrot.slane %v1538, %v1542
        %v1545 = vadd.f32 %v1537, %v1543
        %vm1546 = vcmask 261120
        %1547 = vst.msk [vmem:[%s277] sm:$0xff] %vm1546, %v1545
        %s1548 = sand.u32 %s180, 1
        %s1549 = scalar_lea.sflag [#allocation3], %s1548
        %s1550 = sand.u32 %s180, 1
        %s1551 = smul.addr %s1550, 8
        %s1552 = scalar_lea.vmem [#allocation2], %s1551
        // Predicated region
        $region45: #{tpu_custom_call.1} parent=43 // pred_check
          %p1553 = pneg %p190
        $region46: #{tpu_custom_call.1} parent=43 // pred_check_branch
          %1555 = sbr.rel (%p1553) target = $region48
        $region47: #{tpu_custom_call.1} parent=43 // pred_region
          %s1557 = ssub.s32 128, 128
          %1558 = vsyncadd %s1549, %s1557
          %s1559 = sadd.s32 %s25, %s24
          %s1560 = smul.addr %s1559, 128
          %s1561 = scalar_lea.hbm %s6, %s1560
          %s1563 = sshll.u32 %s1552, 4
          %s1564 = int_to_ptr.vmem [resolvable:$true] %s1563
          %1566 = dma.vmem_to_hbm [thread:$0]  %s1564, 128, %s1561, %s1549
        $region48: #{tpu_custom_call.1} parent=43 // pred_fallthru
          _
      $region44: #{tpu_custom_call.1} parent=5 // pred_fallthru
        _
      %p1567 = scmp.le.s32.totalorder 2, %s15
      // Predicated region
      $region49: #{tpu_custom_call.1} parent=5 // pred_check
        %p1568 = pneg %p1567
      $region50: #{tpu_custom_call.1} parent=5 // pred_check_branch
        %1570 = sbr.rel (%p1568) target = $region52
      $region51: #{tpu_custom_call.1} parent=5 // pred_region
        %s1571 = ssub.s32 %s15, 2
        // Predicated region
        $region53: #{tpu_custom_call.1} parent=51 // pred_check
          %p1572 = pneg %p196
        $region54: #{tpu_custom_call.1} parent=51 // pred_check_branch
          %1574 = sbr.rel (%p1572) target = $region56
        $region55: #{tpu_custom_call.1} parent=51 // pred_region
          %s1575 = sand.u32 %s181, 1
          %s1576 = scalar_lea.sflag [#allocation3], %s1575
          %s1577 = sand.u32 %s181, 1
          %s1578 = smul.addr %s1577, 8
          %s1579 = scalar_lea.vmem [#allocation2], %s1578
          %1580 = dma.done %s1576, 128
        $region56: #{tpu_custom_call.1} parent=51 // pred_fallthru
          _
      $region52: #{tpu_custom_call.1} parent=5 // pred_fallthru
        _
    $region6: #{tpu_custom_call.1} parent=1 // loop_footer
      %s19 = sadd.s32 1, %s15
    $region7: #{tpu_custom_call.1} parent=1 // loop_footer_branch
      %14 = sbr.rel target = $region3
    $region8: #{tpu_custom_call.1} parent=1 // loop_exit
      _
    %1581 = vsyncpa [#allocation3], 1
    %s1582 = scalar_lea.sflag [#allocation3], 1
    %1583 = vsyncpa %s1582, 1

</llo_original>
